<compile_context>
chip_gen: v7x
topology: tpu7x:2x2x1
jax: 0.10.0
libtpu: 0.0.40
codegen_flags: <defaults>
</compile_context>

<pallas_src>
import jax
import jax.numpy as jnp
from jax import lax
from jax.experimental import pallas as pl
from jax.experimental.pallas import tpu as pltpu


def _round_up(x, m):
    return ((x + m - 1) // m) * m


# -----------------------------------------------------------------------------
# Fused kernel: per-N-tile projection, visibility mask, separable bilinear
# sampling (MXU), pairwise cosine similarities, view-weight MLP and fusion.
# Grid = (num N tiles,); the small view loop is unrolled inside the body.
# -----------------------------------------------------------------------------
def _make_fused_kernel(n_views, c, fh, fw, im_h, im_w, tile_n, n_true):
    bw = float(im_w) - 1.0
    bh = float(im_h) - 1.0

    def kernel(w4_ref, proj6_ref, coff_ref, feats_ref, g_ref,
               w1_ref, b1_ref, w2_ref, b2_ref,
               fused_ref, imz_ref, vw_ref, cnt_ref):
        t = pl.program_id(0)
        w4 = w4_ref[...]                                          # (4, TN)
        lane = lax.broadcasted_iota(jnp.int32, (1, tile_n), 1)
        validf = ((t * tile_n + lane) < n_true).astype(jnp.float32)

        samp, zs, ms = [], [], []
        for v in range(n_views):
            m6 = proj6_ref[v]                                     # (6, 4)
            # rows 0..2: feature-map proj (x,y,z); rows 3..5: image proj
            p6 = jnp.dot(m6, w4, preferred_element_type=jnp.float32)  # (6, TN)
            x = p6[0:1, :]
            y = p6[1:2, :]
            z = p6[2:3, :]

            # ---- visibility mask: 8 corners via linear offsets, no divides --
            co = coff_ref[v]                                      # (8, 3)
            cx = jnp.broadcast_to(p6[3:4, :], (8, tile_n)) + co[:, 0:1]
            cy = jnp.broadcast_to(p6[4:5, :], (8, tile_n)) + co[:, 1:2]
            cz = jnp.broadcast_to(p6[5:6, :], (8, tile_n)) + co[:, 2:3]
            okx = jnp.abs(2.0 * cx - bw * cz) <= 1.1 * bw * cz
            oky = jnp.abs(2.0 * cy - bh * cz) <= 1.1 * bh * cz
            ok = (okx & oky & (cz > 0.0)).astype(jnp.float32)     # (8, TN)
            maskf = jnp.max(ok, axis=0, keepdims=True) * validf   # (1, TN)

            # ---- bilinear grid_sample (border, align_corners=True) ----------
            z_safe = jnp.where(jnp.abs(z) > 1e-10, z, 1e-10)      # no NaN/inf
            rz = 1.0 / z_safe
            ix = jnp.clip(x * rz, 0.0, fw - 1.0)
            iy = jnp.clip(y * rz, 0.0, fh - 1.0)
            x0f = jnp.floor(ix)
            y0f = jnp.floor(iy)
            wx1 = ix - x0f
            wy1 = iy - y0f
            wx0 = 1.0 - wx1
            wy0 = 1.0 - wy1
            x0 = x0f.astype(jnp.int32)
            y0 = y0f.astype(jnp.int32)
            x1 = jnp.minimum(x0 + 1, fw - 1)
            y1 = jnp.minimum(y0 + 1, fh - 1)

            iw = lax.broadcasted_iota(jnp.int32, (fw, tile_n), 0)
            ih = lax.broadcasted_iota(jnp.int32, (fh, tile_n), 0)
            ox = (jnp.where(iw == x0, wx0, 0.0)
                  + jnp.where(iw == x1, wx1, 0.0)).astype(jnp.bfloat16)
            oy = (jnp.where(ih == y0, wy0, 0.0)
                  + jnp.where(ih == y1, wy1, 0.0))                # (FH, TN)

            # MXU: contract x with the column one-hot (bf16 in, f32 acc)
            tmp = jnp.dot(feats_ref[v], ox,
                          preferred_element_type=jnp.float32)     # (C*FH, TN)
            # weight by the row one-hot, then group-sum over FH via small matmul
            oy_rep = jnp.concatenate([oy] * c, axis=0)            # (C*FH, TN)
            weighted = tmp * oy_rep
            sampled = jnp.dot(g_ref[...], weighted,
                              preferred_element_type=jnp.float32)  # (C, TN)

            samp.append(sampled * maskf)
            zs.append(z * maskf)
            ms.append(maskf)

        # ---- pairwise cosine similarity: unique pairs, mirrored -------------
        fn = [f * lax.rsqrt(jnp.sum(f * f, axis=0, keepdims=True) + 1e-20)
              for f in samp]
        sim = {}
        for i in range(n_views):
            for j in range(i + 1, n_views):
                s = jnp.sum(fn[i] * fn[j], axis=0, keepdims=True)
                sim[(i, j)] = s
                sim[(j, i)] = s
        vis = jnp.concatenate(
            [sim[(i, j)] for i in range(n_views)
             for j in range(n_views) if j != i], axis=0)          # (V*(V-1), TN)

        # ---- mean projected depth (globally normalized in a 2nd pass) -------
        msum = ms[0]
        zsum = zs[0]
        for v in range(1, n_views):
            msum = msum + ms[v]
            zsum = zsum + zs[v]
        im_z = zsum / (msum + 1e-10)                              # (1, TN)

        # TODO(synk): the SCNN torchsparse sparse-conv view selector has no
        # clean Pallas equivalent; replaced by a deterministic per-point MLP
        # with the same (similarity_dim -> n_views) interface.
        h1 = jnp.maximum(
            jnp.dot(w1_ref[...], vis, preferred_element_type=jnp.float32)
            + b1_ref[...], 0.0)
        logits = (jnp.dot(w2_ref[...], h1, preferred_element_type=jnp.float32)
                  + b2_ref[...])
        wsel = pl.reciprocal(1.0 + jnp.exp(-logits), approx=True)  # sigmoid
        mstack = jnp.concatenate(ms, axis=0)                       # (V, TN)
        vw = wsel * mstack

        fused = samp[0] * vw[0:1, :]
        for v in range(1, n_views):
            fused = fused + samp[v] * vw[v:v + 1, :]               # (C, TN)

        fused_ref[...] = fused
        imz_ref[...] = im_z
        vw_ref[...] = vw
        cnt_ref[...] = msum

    return kernel


def fused_project_sample_fuse(w4, proj6, corner_off, feats_rs_bf16, g_mat,
                              w1, b1, w2, b2, im_h, im_w, fh, fw,
                              tile_n, n_true):
    n_views = feats_rs_bf16.shape[0]
    c = g_mat.shape[0]
    npad = w4.shape[1]
    n_tiles = npad // tile_n
    kernel = _make_fused_kernel(n_views, c, fh, fw, im_h, im_w, tile_n, n_true)

    out_shape = (
        jax.ShapeDtypeStruct((c, npad), jnp.float32),        # fused features
        jax.ShapeDtypeStruct((1, npad), jnp.float32),        # raw mean depth
        jax.ShapeDtypeStruct((n_views, npad), jnp.float32),  # view weights
        jax.ShapeDtypeStruct((1, npad), jnp.float32),        # count
    )
    return pl.pallas_call(
        kernel,
        out_shape=out_shape,
        grid=(n_tiles,),
        in_specs=[
            pl.BlockSpec((4, tile_n), lambda t: (0, t)),
            pl.BlockSpec(proj6.shape, lambda t: (0, 0, 0)),
            pl.BlockSpec(corner_off.shape, lambda t: (0, 0, 0)),
            pl.BlockSpec(feats_rs_bf16.shape, lambda t: (0, 0, 0)),
            pl.BlockSpec(g_mat.shape, lambda t: (0, 0)),
            pl.BlockSpec(w1.shape, lambda t: (0, 0)),
            pl.BlockSpec(b1.shape, lambda t: (0, 0)),
            pl.BlockSpec(w2.shape, lambda t: (0, 0)),
            pl.BlockSpec(b2.shape, lambda t: (0, 0)),
        ],
        out_specs=(
            pl.BlockSpec((c, tile_n), lambda t: (0, t)),
            pl.BlockSpec((1, tile_n), lambda t: (0, t)),
            pl.BlockSpec((n_views, tile_n), lambda t: (0, t)),
            pl.BlockSpec((1, tile_n), lambda t: (0, t)),
        ),
        compiler_params=pltpu.CompilerParams(
            dimension_semantics=("parallel",),
            vmem_limit_bytes=48 * 1024 * 1024),
    )(w4, proj6, corner_off, feats_rs_bf16, g_mat, w1, b1, w2, b2)


# -----------------------------------------------------------------------------
# Second pass: global mean/std normalization of the per-voxel mean depth
# (a whole-batch reduction, so it cannot be fused into the N-tiled kernel).
# Padded entries have im_z == 0 and are automatically excluded (im_z > 0 gate).
# -----------------------------------------------------------------------------
def _znorm_kernel(imz_ref, out_ref):
    imz = imz_ref[...]                                            # (1, Npad)
    pos = (imz > 0.0).astype(jnp.float32)
    npos = jnp.maximum(jnp.sum(pos, axis=1, keepdims=True), 1.0)
    zmean = jnp.sum(imz * pos, axis=1, keepdims=True) / npos
    diff = (imz - zmean) * pos
    zstd = jnp.sqrt(jnp.sum(diff * diff, axis=1, keepdims=True)) + 1e-5
    out_ref[...] = jnp.where(imz > 0.0, (imz - zmean) / zstd, 0.0)


def normalize_depth(im_z):
    return pl.pallas_call(
        _znorm_kernel,
        out_shape=jax.ShapeDtypeStruct(im_z.shape, jnp.float32),
    )(im_z)


# -----------------------------------------------------------------------------
# Wrapper reproducing VisibleFusion.forward (output_gt=False).
# -----------------------------------------------------------------------------
def visible_fusion_forward(coords, feats, proj_matrices, vol_origin_partial,
                           img_hw, voxel_size, scale, params,
                           max_tile_n=1024):
    """coords: (N,4) [batch,x,y,z], batches contiguous with equal counts.
    feats: (V,B,C,H,W).  proj_matrices: (B,V,2,4,4) (stage 0 = full image,
    stage scale+1 = feature map).  vol_origin_partial: (B,3).
    Returns (feature_volume (N,C+1), view_weights (N,V), None, count (N,))."""
    n_views, bs, c, fh, fw = feats.shape
    im_h, im_w = img_hw
    n_all = coords.shape[0]
    # TODO(synk): torch.nonzero per-batch gather is data-dependent; assume
    # contiguous batches with equal point counts instead.
    npb = n_all // bs

    tile_n = min(max_tile_n, _round_up(npb, 128))
    npad = _round_up(npb, tile_n)

    corners_base = jnp.array(
        [[0.5, 0.5, 0.5], [0.5, 0.5, -0.5], [0.5, -0.5, 0.5], [0.5, -0.5, -0.5],
         [-0.5, 0.5, 0.5], [-0.5, 0.5, -0.5], [-0.5, -0.5, 0.5],
         [-0.5, -0.5, -0.5]], jnp.float32)                        # (8, 3)
    corners_xyz = corners_base.T * (voxel_size * (2.0 ** scale))  # (3, 8)

    # Group-sum matrix for the separable bilinear sampling: (C, C*FH)
    g_mat = jnp.kron(jnp.eye(c, dtype=jnp.float32),
                     jnp.ones((1, fh), jnp.float32))

    feat_out, vw_out, cnt_out = [], [], []
    for b in range(bs):
        cb = coords[b * npb:(b + 1) * npb, 1:]                    # (Np, 3)
        world = cb * voxel_size + vol_origin_partial[b][None, :]
        w4 = jnp.concatenate(
            [world, jnp.ones((npb, 1), jnp.float32)], axis=1).T   # (4, Np)
        w4 = jnp.pad(w4, ((0, 0), (0, npad - npb)))               # (4, Npad)

        feats_rs = feats[:, b].reshape(
            n_views, c * fh, fw).astype(jnp.bfloat16)             # (V, C*FH, FW)
        proj_img = proj_matrices[b, :, 0]                         # (V, 4, 4)
        proj_feat = proj_matrices[b, :, scale + 1]                # (V, 4, 4)
        proj6 = jnp.concatenate(
            [proj_feat[:, :3, :], proj_img[:, :3, :]], axis=1)    # (V, 6, 4)
        corner_off = jnp.einsum('vij,jk->vki',
                                proj_img[:, :3, :3], corners_xyz)  # (V, 8, 3)

        fused, im_z, vw, cnt = fused_project_sample_fuse(
            w4, proj6, corner_off, feats_rs, g_mat,
            params['w1'], params['b1'], params['w2'], params['b2'],
            float(im_h), float(im_w), fh, fw, tile_n, npb)

        im_z_norm = normalize_depth(im_z)                         # (1, Npad)

        feat_b = jnp.concatenate([fused, im_z_norm], axis=0)[:, :npb].T
        feat_out.append(feat_b)                                   # (Np, C+1)
        vw_out.append(vw[:, :npb].T)                              # (Np, V)
        cnt_out.append(cnt[0, :npb])                              # (Np,)

    # TODO(synk): world_to_aligned_camera coordinate transform only feeds the
    # skipped SCNN sparse-conv geometry (PointTensor), so it is omitted here.
    feature_volume = jnp.concatenate(feat_out, axis=0)
    view_weights = jnp.concatenate(vw_out, axis=0)
    count = jnp.concatenate(cnt_out, axis=0)
    return feature_volume, view_weights, None, count


if __name__ == "__main__":
    key = jax.random.PRNGKey(0)
    V, B, C, FH, FW = 3, 2, 8, 16, 16          # views, batch, channels, feat HW
    IM_H, IM_W = 64, 64                        # raw image size (mask only)
    NPB = 128                                  # voxels per batch
    VOXEL_SIZE = 0.05
    SCALE = 0
    HIDDEN = 32
    SIM_DIM = V * (V - 1)

    k_coord, k_feat, k_w1, k_b1, k_w2, k_b2 = jax.random.split(key, 6)

    xyz = jax.random.randint(k_coord, (B * NPB, 3), 0, 24).astype(jnp.float32)
    bidx = jnp.repeat(jnp.arange(B, dtype=jnp.float32), NPB)[:, None]
    coords = jnp.concatenate([bidx, xyz], axis=1)               # (256, 4)

    feats = jax.random.normal(k_feat, (V, B, C, FH, FW), jnp.float32)

    def pinhole(f, cx, cy, tx, ty, tz):
        k_mat = jnp.array([[f, 0.0, cx, 0.0], [0.0, f, cy, 0.0],
                           [0.0, 0.0, 1.0, 0.0], [0.0, 0.0, 0.0, 1.0]],
                          jnp.float32)
        t_mat = jnp.array([[1.0, 0.0, 0.0, tx], [0.0, 1.0, 0.0, ty],
                           [0.0, 0.0, 1.0, tz], [0.0, 0.0, 0.0, 1.0]],
                          jnp.float32)
        return k_mat @ t_mat

    proj = []
    for b in range(B):
        per_view = []
        for v in range(V):
            tx = 0.15 * v - 0.15 + 0.05 * b
            ty = 0.10 * v - 0.10
            tz = 0.9 + 0.15 * v + 0.05 * b
            p_img = pinhole(80.0, (IM_W - 1) / 2.0, (IM_H - 1) / 2.0, tx, ty, tz)
            p_feat = pinhole(10.0, (FW - 1) / 2.0, (FH - 1) / 2.0, tx, ty, tz)
            per_view.append(jnp.stack([p_img, p_feat], axis=0))
        proj.append(jnp.stack(per_view, axis=0))
    proj_matrices = jnp.stack(proj, axis=0)                     # (B, V, 2, 4, 4)

    vol_origin = jnp.array([[-0.6, -0.6, 0.2], [-0.55, -0.65, 0.25]],
                           jnp.float32)

    params = {
        'w1': jax.random.normal(k_w1, (HIDDEN, SIM_DIM), jnp.float32) * 0.3,
        'b1': jax.random.normal(k_b1, (HIDDEN, 1), jnp.float32) * 0.1,
        'w2': jax.random.normal(k_w2, (V, HIDDEN), jnp.float32) * 0.3,
        'b2': jax.random.normal(k_b2, (V, 1), jnp.float32) * 0.1,
    }

    feature_volume, view_weights, vis_target, count = visible_fusion_forward(
        coords, feats, proj_matrices, vol_origin, (IM_H, IM_W),
        VOXEL_SIZE, SCALE, params)
    jax.block_until_ready((feature_volume, view_weights, count))

    assert feature_volume.shape == (B * NPB, C + 1)
    assert view_weights.shape == (B * NPB, V)
    assert count.shape == (B * NPB,)
    assert vis_target is None
    assert bool(jnp.all(jnp.isfinite(feature_volume)))
    assert bool(jnp.all(jnp.isfinite(view_weights)))
    assert bool(jnp.all(jnp.isfinite(count)))
    print("KERNEL_OK")
</pallas_src>

<mosaic_0001>
module attributes {stable_mosaic.version = 11 : i64} {
  func.func @kernel(%arg0: i32, %arg1: memref<4x128xf32, #tpu.memory_space<vmem>>, %arg2: memref<3x6x4xf32, #tpu.memory_space<vmem>>, %arg3: memref<3x8x3xf32, #tpu.memory_space<vmem>>, %arg4: memref<3x128x16xbf16, #tpu.memory_space<vmem>>, %arg5: memref<8x128xf32, #tpu.memory_space<vmem>>, %arg6: memref<32x6xf32, #tpu.memory_space<vmem>>, %arg7: memref<32x1xf32, #tpu.memory_space<vmem>>, %arg8: memref<3x32xf32, #tpu.memory_space<vmem>>, %arg9: memref<3x1xf32, #tpu.memory_space<vmem>>, %arg10: memref<8x128xf32, #tpu.memory_space<vmem>>, %arg11: memref<1x128xf32, #tpu.memory_space<vmem>>, %arg12: memref<3x128xf32, #tpu.memory_space<vmem>>, %arg13: memref<1x128xf32, #tpu.memory_space<vmem>>) attributes {dimension_semantics = [#tpu.dimension_semantics<parallel>], iteration_bounds = array<i64: 1>, scalar_prefetch = 0 : i64, scratch_operands = 0 : i64, tpu.core_type = #tpu.core_type<tc>, window_params = [{transform_indices = @transform_0, window_bounds = array<i64: 4, 128>}, {pipeline_mode = #tpu.pipeline_mode<synchronous>, transform_indices = @transform_1, window_bounds = array<i64: 3, 6, 4>}, {pipeline_mode = #tpu.pipeline_mode<synchronous>, transform_indices = @transform_2, window_bounds = array<i64: 3, 8, 3>}, {pipeline_mode = #tpu.pipeline_mode<synchronous>, transform_indices = @transform_3, window_bounds = array<i64: 3, 128, 16>}, {pipeline_mode = #tpu.pipeline_mode<synchronous>, transform_indices = @transform_4, window_bounds = array<i64: 8, 128>}, {pipeline_mode = #tpu.pipeline_mode<synchronous>, transform_indices = @transform_5, window_bounds = array<i64: 32, 6>}, {pipeline_mode = #tpu.pipeline_mode<synchronous>, transform_indices = @transform_6, window_bounds = array<i64: 32, 1>}, {pipeline_mode = #tpu.pipeline_mode<synchronous>, transform_indices = @transform_7, window_bounds = array<i64: 3, 32>}, {pipeline_mode = #tpu.pipeline_mode<synchronous>, transform_indices = @transform_8, window_bounds = array<i64: 3, 1>}, {transform_indices = @transform_9, window_bounds = array<i64: 8, 128>}, {transform_indices = @transform_10, window_bounds = array<i64: 1, 128>}, {transform_indices = @transform_11, window_bounds = array<i64: 3, 128>}, {transform_indices = @transform_12, window_bounds = array<i64: 1, 128>}]} {
    %c0 = arith.constant 0 : index
    %c0_0 = arith.constant 0 : index
    %0 = vector.load %arg1[%c0, %c0_0] : memref<4x128xf32, #tpu.memory_space<vmem>>, vector<4x128xf32>
    %1 = tpu.iota {dimensions = array<i32: 1>} : vector<1x128xi32>
    %c128_i32 = arith.constant 128 : i32
    %2 = arith.muli %arg0, %c128_i32 : i32
    %3 = vector.broadcast %2 : i32 to vector<1x128xi32>
    %4 = arith.addi %3, %1 : vector<1x128xi32>
    %c128_i32_1 = arith.constant 128 : i32
    %5 = vector.broadcast %c128_i32_1 : i32 to vector<1x128xi32>
    %6 = arith.cmpi slt, %4, %5 : vector<1x128xi32>
    %7 = arith.extui %6 : vector<1x128xi1> to vector<1x128xi32>
    %8 = arith.sitofp %7 : vector<1x128xi32> to vector<1x128xf32>
    %c0_2 = arith.constant 0 : index
    %c0_3 = arith.constant 0 : index
    %c0_4 = arith.constant 0 : index
    %9 = vector.load %arg2[%c0_2, %c0_3, %c0_4] : memref<3x6x4xf32, #tpu.memory_space<vmem>>, vector<1x6x4xf32>
    %10 = vector.shape_cast %9 : vector<1x6x4xf32> to vector<6x4xf32>
    %cst = arith.constant dense<0.000000e+00> : vector<6x128xf32>
    %11 = tpu.matmul %10, %0, %cst {dimension_numbers = #tpu.dot_dimension_numbers<[1], [0], [0], [1], [0, 0, 1, 1], [], []>} : vector<6x4xf32>, vector<4x128xf32>, vector<6x128xf32> -> vector<6x128xf32>
    %12 = vector.extract_strided_slice %11 {offsets = [0, 0], sizes = [1, 128], strides = [1, 1]} : vector<6x128xf32> to vector<1x128xf32>
    %13 = vector.extract_strided_slice %11 {offsets = [1, 0], sizes = [1, 128], strides = [1, 1]} : vector<6x128xf32> to vector<1x128xf32>
    %14 = vector.extract_strided_slice %11 {offsets = [2, 0], sizes = [1, 128], strides = [1, 1]} : vector<6x128xf32> to vector<1x128xf32>
    %c0_5 = arith.constant 0 : index
    %c0_6 = arith.constant 0 : index
    %c0_7 = arith.constant 0 : index
    %15 = vector.load %arg3[%c0_5, %c0_6, %c0_7] : memref<3x8x3xf32, #tpu.memory_space<vmem>>, vector<1x8x3xf32>
    %16 = vector.shape_cast %15 : vector<1x8x3xf32> to vector<8x3xf32>
    %17 = vector.extract_strided_slice %11 {offsets = [3, 0], sizes = [1, 128], strides = [1, 1]} : vector<6x128xf32> to vector<1x128xf32>
    %18 = vector.shape_cast %17 : vector<1x128xf32> to vector<1x128xf32>
    %19 = vector.broadcast %18 : vector<1x128xf32> to vector<8x128xf32>
    %20 = vector.extract_strided_slice %16 {offsets = [0, 0], sizes = [8, 1], strides = [1, 1]} : vector<8x3xf32> to vector<8x1xf32>
    %21 = vector.broadcast %20 : vector<8x1xf32> to vector<8x128xf32>
    %22 = arith.addf %19, %21 : vector<8x128xf32>
    %23 = vector.extract_strided_slice %11 {offsets = [4, 0], sizes = [1, 128], strides = [1, 1]} : vector<6x128xf32> to vector<1x128xf32>
    %24 = vector.shape_cast %23 : vector<1x128xf32> to vector<1x128xf32>
    %25 = vector.broadcast %24 : vector<1x128xf32> to vector<8x128xf32>
    %26 = vector.extract_strided_slice %16 {offsets = [0, 1], sizes = [8, 1], strides = [1, 1]} : vector<8x3xf32> to vector<8x1xf32>
    %27 = vector.broadcast %26 : vector<8x1xf32> to vector<8x128xf32>
    %28 = arith.addf %25, %27 : vector<8x128xf32>
    %29 = vector.extract_strided_slice %11 {offsets = [5, 0], sizes = [1, 128], strides = [1, 1]} : vector<6x128xf32> to vector<1x128xf32>
    %30 = vector.shape_cast %29 : vector<1x128xf32> to vector<1x128xf32>
    %31 = vector.broadcast %30 : vector<1x128xf32> to vector<8x128xf32>
    %32 = vector.extract_strided_slice %16 {offsets = [0, 2], sizes = [8, 1], strides = [1, 1]} : vector<8x3xf32> to vector<8x1xf32>
    %33 = vector.broadcast %32 : vector<8x1xf32> to vector<8x128xf32>
    %34 = arith.addf %31, %33 : vector<8x128xf32>
    %cst_8 = arith.constant 2.000000e+00 : f32
    %35 = vector.broadcast %cst_8 : f32 to vector<8x128xf32>
    %36 = arith.mulf %35, %22 : vector<8x128xf32>
    %cst_9 = arith.constant 6.300000e+01 : f32
    %37 = vector.broadcast %cst_9 : f32 to vector<8x128xf32>
    %38 = arith.mulf %37, %34 : vector<8x128xf32>
    %39 = arith.subf %36, %38 : vector<8x128xf32>
    %40 = math.absf %39 : vector<8x128xf32>
    %cst_10 = arith.constant 6.930000e+01 : f32
    %41 = vector.broadcast %cst_10 : f32 to vector<8x128xf32>
    %42 = arith.mulf %41, %34 : vector<8x128xf32>
    %43 = arith.cmpf ole, %40, %42 : vector<8x128xf32>
    %cst_11 = arith.constant 2.000000e+00 : f32
    %44 = vector.broadcast %cst_11 : f32 to vector<8x128xf32>
    %45 = arith.mulf %44, %28 : vector<8x128xf32>
    %cst_12 = arith.constant 6.300000e+01 : f32
    %46 = vector.broadcast %cst_12 : f32 to vector<8x128xf32>
    %47 = arith.mulf %46, %34 : vector<8x128xf32>
    %48 = arith.subf %45, %47 : vector<8x128xf32>
    %49 = math.absf %48 : vector<8x128xf32>
    %cst_13 = arith.constant 6.930000e+01 : f32
    %50 = vector.broadcast %cst_13 : f32 to vector<8x128xf32>
    %51 = arith.mulf %50, %34 : vector<8x128xf32>
    %52 = arith.cmpf ole, %49, %51 : vector<8x128xf32>
    %53 = arith.andi %43, %52 : vector<8x128xi1>
    %cst_14 = arith.constant 0.000000e+00 : f32
    %54 = vector.broadcast %cst_14 : f32 to vector<8x128xf32>
    %55 = arith.cmpf ogt, %34, %54 : vector<8x128xf32>
    %56 = arith.andi %53, %55 : vector<8x128xi1>
    %57 = arith.extui %56 : vector<8x128xi1> to vector<8x128xi32>
    %58 = arith.sitofp %57 : vector<8x128xi32> to vector<8x128xf32>
    %cst_15 = arith.constant dense<0xFF800000> : vector<128xf32>
    %59 = vector.multi_reduction <maximumf>, %58, %cst_15 [0] : vector<8x128xf32> to vector<128xf32>
    %60 = vector.shape_cast %59 : vector<128xf32> to vector<1x128xf32>
    %61 = arith.mulf %60, %8 : vector<1x128xf32>
    %62 = math.absf %14 : vector<1x128xf32>
    %cst_16 = arith.constant 1.000000e-10 : f32
    %63 = vector.broadcast %cst_16 : f32 to vector<1x128xf32>
    %64 = arith.cmpf ogt, %62, %63 : vector<1x128xf32>
    %cst_17 = arith.constant 1.000000e-10 : f32
    %65 = vector.broadcast %cst_17 : f32 to vector<1x128xf32>
    %66 = arith.select %64, %14, %65 : vector<1x128xi1>, vector<1x128xf32>
    %cst_18 = arith.constant 1.000000e+00 : f32
    %67 = vector.broadcast %cst_18 : f32 to vector<1x128xf32>
    %68 = arith.divf %67, %66 : vector<1x128xf32>
    %69 = arith.mulf %12, %68 : vector<1x128xf32>
    %cst_19 = arith.constant 0.000000e+00 : f32
    %cst_20 = arith.constant 1.500000e+01 : f32
    %70 = vector.broadcast %cst_19 : f32 to vector<1x128xf32>
    %71 = arith.maximumf %70, %69 : vector<1x128xf32>
    %72 = vector.broadcast %cst_20 : f32 to vector<1x128xf32>
    %73 = arith.minimumf %72, %71 : vector<1x128xf32>
    %74 = arith.mulf %13, %68 : vector<1x128xf32>
    %cst_21 = arith.constant 0.000000e+00 : f32
    %cst_22 = arith.constant 1.500000e+01 : f32
    %75 = vector.broadcast %cst_21 : f32 to vector<1x128xf32>
    %76 = arith.maximumf %75, %74 : vector<1x128xf32>
    %77 = vector.broadcast %cst_22 : f32 to vector<1x128xf32>
    %78 = arith.minimumf %77, %76 : vector<1x128xf32>
    %79 = math.floor %73 : vector<1x128xf32>
    %80 = math.floor %78 : vector<1x128xf32>
    %81 = arith.subf %73, %79 : vector<1x128xf32>
    %82 = arith.subf %78, %80 : vector<1x128xf32>
    %cst_23 = arith.constant 1.000000e+00 : f32
    %83 = vector.broadcast %cst_23 : f32 to vector<1x128xf32>
    %84 = arith.subf %83, %81 : vector<1x128xf32>
    %cst_24 = arith.constant 1.000000e+00 : f32
    %85 = vector.broadcast %cst_24 : f32 to vector<1x128xf32>
    %86 = arith.subf %85, %82 : vector<1x128xf32>
    %87 = arith.fptosi %79 : vector<1x128xf32> to vector<1x128xi32>
    %88 = arith.fptosi %80 : vector<1x128xf32> to vector<1x128xi32>
    %c1_i32 = arith.constant 1 : i32
    %89 = vector.broadcast %c1_i32 : i32 to vector<1x128xi32>
    %90 = arith.addi %87, %89 : vector<1x128xi32>
    %c15_i32 = arith.constant 15 : i32
    %91 = vector.broadcast %c15_i32 : i32 to vector<1x128xi32>
    %92 = arith.minsi %90, %91 : vector<1x128xi32>
    %c1_i32_25 = arith.constant 1 : i32
    %93 = vector.broadcast %c1_i32_25 : i32 to vector<1x128xi32>
    %94 = arith.addi %88, %93 : vector<1x128xi32>
    %c15_i32_26 = arith.constant 15 : i32
    %95 = vector.broadcast %c15_i32_26 : i32 to vector<1x128xi32>
    %96 = arith.minsi %94, %95 : vector<1x128xi32>
    %97 = tpu.iota {dimensions = array<i32: 0>} : vector<16x128xi32>
    %98 = tpu.iota {dimensions = array<i32: 0>} : vector<16x128xi32>
    %99 = vector.broadcast %87 : vector<1x128xi32> to vector<16x128xi32>
    %100 = arith.cmpi eq, %97, %99 : vector<16x128xi32>
    %cst_27 = arith.constant 0.000000e+00 : f32
    %101 = vector.shape_cast %84 : vector<1x128xf32> to vector<1x128xf32>
    %102 = vector.broadcast %101 : vector<1x128xf32> to vector<16x128xf32>
    %103 = vector.broadcast %cst_27 : f32 to vector<16x128xf32>
    %104 = arith.select %100, %102, %103 : vector<16x128xi1>, vector<16x128xf32>
    %105 = vector.broadcast %92 : vector<1x128xi32> to vector<16x128xi32>
    %106 = arith.cmpi eq, %97, %105 : vector<16x128xi32>
    %cst_28 = arith.constant 0.000000e+00 : f32
    %107 = vector.shape_cast %81 : vector<1x128xf32> to vector<1x128xf32>
    %108 = vector.broadcast %107 : vector<1x128xf32> to vector<16x128xf32>
    %109 = vector.broadcast %cst_28 : f32 to vector<16x128xf32>
    %110 = arith.select %106, %108, %109 : vector<16x128xi1>, vector<16x128xf32>
    %111 = arith.addf %104, %110 : vector<16x128xf32>
    %112 = arith.truncf %111 : vector<16x128xf32> to vector<16x128xbf16>
    %113 = vector.broadcast %88 : vector<1x128xi32> to vector<16x128xi32>
    %114 = arith.cmpi eq, %98, %113 : vector<16x128xi32>
    %cst_29 = arith.constant 0.000000e+00 : f32
    %115 = vector.shape_cast %86 : vector<1x128xf32> to vector<1x128xf32>
    %116 = vector.broadcast %115 : vector<1x128xf32> to vector<16x128xf32>
    %117 = vector.broadcast %cst_29 : f32 to vector<16x128xf32>
    %118 = arith.select %114, %116, %117 : vector<16x128xi1>, vector<16x128xf32>
    %119 = vector.broadcast %96 : vector<1x128xi32> to vector<16x128xi32>
    %120 = arith.cmpi eq, %98, %119 : vector<16x128xi32>
    %cst_30 = arith.constant 0.000000e+00 : f32
    %121 = vector.shape_cast %82 : vector<1x128xf32> to vector<1x128xf32>
    %122 = vector.broadcast %121 : vector<1x128xf32> to vector<16x128xf32>
    %123 = vector.broadcast %cst_30 : f32 to vector<16x128xf32>
    %124 = arith.select %120, %122, %123 : vector<16x128xi1>, vector<16x128xf32>
    %125 = arith.addf %118, %124 : vector<16x128xf32>
    %c0_31 = arith.constant 0 : index
    %c0_32 = arith.constant 0 : index
    %c0_33 = arith.constant 0 : index
    %126 = vector.load %arg4[%c0_31, %c0_32, %c0_33] : memref<3x128x16xbf16, #tpu.memory_space<vmem>>, vector<1x128x16xbf16>
    %127 = vector.shape_cast %126 : vector<1x128x16xbf16> to vector<128x16xbf16>
    %cst_34 = arith.constant dense<0.000000e+00> : vector<128x128xf32>
    %128 = tpu.matmul %127, %112, %cst_34 {dimension_numbers = #tpu.dot_dimension_numbers<[1], [0], [0], [1], [0, 0, 1, 1], [], []>} : vector<128x16xbf16>, vector<16x128xbf16>, vector<128x128xf32> -> vector<128x128xf32>
    %129 = tpu.concatenate %125, %125, %125, %125, %125, %125, %125, %125 in 0 : vector<16x128xf32>, vector<16x128xf32>, vector<16x128xf32>, vector<16x128xf32>, vector<16x128xf32>, vector<16x128xf32>, vector<16x128xf32>, vector<16x128xf32> -> vector<128x128xf32>
    %130 = arith.mulf %128, %129 : vector<128x128xf32>
    %c0_35 = arith.constant 0 : index
    %c0_36 = arith.constant 0 : index
    %131 = vector.load %arg5[%c0_35, %c0_36] : memref<8x128xf32, #tpu.memory_space<vmem>>, vector<8x128xf32>
    %cst_37 = arith.constant dense<0.000000e+00> : vector<8x128xf32>
    %132 = tpu.matmul %131, %130, %cst_37 {dimension_numbers = #tpu.dot_dimension_numbers<[1], [0], [0], [1], [0, 0, 1, 1], [], []>} : vector<8x128xf32>, vector<128x128xf32>, vector<8x128xf32> -> vector<8x128xf32>
    %133 = vector.broadcast %61 : vector<1x128xf32> to vector<8x128xf32>
    %134 = arith.mulf %132, %133 : vector<8x128xf32>
    %135 = arith.mulf %14, %61 : vector<1x128xf32>
    %c1 = arith.constant 1 : index
    %c0_38 = arith.constant 0 : index
    %c0_39 = arith.constant 0 : index
    %136 = vector.load %arg2[%c1, %c0_38, %c0_39] : memref<3x6x4xf32, #tpu.memory_space<vmem>>, vector<1x6x4xf32>
    %137 = vector.shape_cast %136 : vector<1x6x4xf32> to vector<6x4xf32>
    %cst_40 = arith.constant dense<0.000000e+00> : vector<6x128xf32>
    %138 = tpu.matmul %137, %0, %cst_40 {dimension_numbers = #tpu.dot_dimension_numbers<[1], [0], [0], [1], [0, 0, 1, 1], [], []>} : vector<6x4xf32>, vector<4x128xf32>, vector<6x128xf32> -> vector<6x128xf32>
    %139 = vector.extract_strided_slice %138 {offsets = [0, 0], sizes = [1, 128], strides = [1, 1]} : vector<6x128xf32> to vector<1x128xf32>
    %140 = vector.extract_strided_slice %138 {offsets = [1, 0], sizes = [1, 128], strides = [1, 1]} : vector<6x128xf32> to vector<1x128xf32>
    %141 = vector.extract_strided_slice %138 {offsets = [2, 0], sizes = [1, 128], strides = [1, 1]} : vector<6x128xf32> to vector<1x128xf32>
    %c1_41 = arith.constant 1 : index
    %c0_42 = arith.constant 0 : index
    %c0_43 = arith.constant 0 : index
    %142 = vector.load %arg3[%c1_41, %c0_42, %c0_43] : memref<3x8x3xf32, #tpu.memory_space<vmem>>, vector<1x8x3xf32>
    %143 = vector.shape_cast %142 : vector<1x8x3xf32> to vector<8x3xf32>
    %144 = vector.extract_strided_slice %138 {offsets = [3, 0], sizes = [1, 128], strides = [1, 1]} : vector<6x128xf32> to vector<1x128xf32>
    %145 = vector.shape_cast %144 : vector<1x128xf32> to vector<1x128xf32>
    %146 = vector.broadcast %145 : vector<1x128xf32> to vector<8x128xf32>
    %147 = vector.extract_strided_slice %143 {offsets = [0, 0], sizes = [8, 1], strides = [1, 1]} : vector<8x3xf32> to vector<8x1xf32>
    %148 = vector.broadcast %147 : vector<8x1xf32> to vector<8x128xf32>
    %149 = arith.addf %146, %148 : vector<8x128xf32>
    %150 = vector.extract_strided_slice %138 {offsets = [4, 0], sizes = [1, 128], strides = [1, 1]} : vector<6x128xf32> to vector<1x128xf32>
    %151 = vector.shape_cast %150 : vector<1x128xf32> to vector<1x128xf32>
    %152 = vector.broadcast %151 : vector<1x128xf32> to vector<8x128xf32>
    %153 = vector.extract_strided_slice %143 {offsets = [0, 1], sizes = [8, 1], strides = [1, 1]} : vector<8x3xf32> to vector<8x1xf32>
    %154 = vector.broadcast %153 : vector<8x1xf32> to vector<8x128xf32>
    %155 = arith.addf %152, %154 : vector<8x128xf32>
    %156 = vector.extract_strided_slice %138 {offsets = [5, 0], sizes = [1, 128], strides = [1, 1]} : vector<6x128xf32> to vector<1x128xf32>
    %157 = vector.shape_cast %156 : vector<1x128xf32> to vector<1x128xf32>
    %158 = vector.broadcast %157 : vector<1x128xf32> to vector<8x128xf32>
    %159 = vector.extract_strided_slice %143 {offsets = [0, 2], sizes = [8, 1], strides = [1, 1]} : vector<8x3xf32> to vector<8x1xf32>
    %160 = vector.broadcast %159 : vector<8x1xf32> to vector<8x128xf32>
    %161 = arith.addf %158, %160 : vector<8x128xf32>
    %cst_44 = arith.constant 2.000000e+00 : f32
    %162 = vector.broadcast %cst_44 : f32 to vector<8x128xf32>
    %163 = arith.mulf %162, %149 : vector<8x128xf32>
    %cst_45 = arith.constant 6.300000e+01 : f32
    %164 = vector.broadcast %cst_45 : f32 to vector<8x128xf32>
    %165 = arith.mulf %164, %161 : vector<8x128xf32>
    %166 = arith.subf %163, %165 : vector<8x128xf32>
    %167 = math.absf %166 : vector<8x128xf32>
    %cst_46 = arith.constant 6.930000e+01 : f32
    %168 = vector.broadcast %cst_46 : f32 to vector<8x128xf32>
    %169 = arith.mulf %168, %161 : vector<8x128xf32>
    %170 = arith.cmpf ole, %167, %169 : vector<8x128xf32>
    %cst_47 = arith.constant 2.000000e+00 : f32
    %171 = vector.broadcast %cst_47 : f32 to vector<8x128xf32>
    %172 = arith.mulf %171, %155 : vector<8x128xf32>
    %cst_48 = arith.constant 6.300000e+01 : f32
    %173 = vector.broadcast %cst_48 : f32 to vector<8x128xf32>
    %174 = arith.mulf %173, %161 : vector<8x128xf32>
    %175 = arith.subf %172, %174 : vector<8x128xf32>
    %176 = math.absf %175 : vector<8x128xf32>
    %cst_49 = arith.constant 6.930000e+01 : f32
    %177 = vector.broadcast %cst_49 : f32 to vector<8x128xf32>
    %178 = arith.mulf %177, %161 : vector<8x128xf32>
    %179 = arith.cmpf ole, %176, %178 : vector<8x128xf32>
    %180 = arith.andi %170, %179 : vector<8x128xi1>
    %cst_50 = arith.constant 0.000000e+00 : f32
    %181 = vector.broadcast %cst_50 : f32 to vector<8x128xf32>
    %182 = arith.cmpf ogt, %161, %181 : vector<8x128xf32>
    %183 = arith.andi %180, %182 : vector<8x128xi1>
    %184 = arith.extui %183 : vector<8x128xi1> to vector<8x128xi32>
    %185 = arith.sitofp %184 : vector<8x128xi32> to vector<8x128xf32>
    %cst_51 = arith.constant dense<0xFF800000> : vector<128xf32>
    %186 = vector.multi_reduction <maximumf>, %185, %cst_51 [0] : vector<8x128xf32> to vector<128xf32>
    %187 = vector.shape_cast %186 : vector<128xf32> to vector<1x128xf32>
    %188 = arith.mulf %187, %8 : vector<1x128xf32>
    %189 = math.absf %141 : vector<1x128xf32>
    %cst_52 = arith.constant 1.000000e-10 : f32
    %190 = vector.broadcast %cst_52 : f32 to vector<1x128xf32>
    %191 = arith.cmpf ogt, %189, %190 : vector<1x128xf32>
    %cst_53 = arith.constant 1.000000e-10 : f32
    %192 = vector.broadcast %cst_53 : f32 to vector<1x128xf32>
    %193 = arith.select %191, %141, %192 : vector<1x128xi1>, vector<1x128xf32>
    %cst_54 = arith.constant 1.000000e+00 : f32
    %194 = vector.broadcast %cst_54 : f32 to vector<1x128xf32>
    %195 = arith.divf %194, %193 : vector<1x128xf32>
    %196 = arith.mulf %139, %195 : vector<1x128xf32>
    %cst_55 = arith.constant 0.000000e+00 : f32
    %cst_56 = arith.constant 1.500000e+01 : f32
    %197 = vector.broadcast %cst_55 : f32 to vector<1x128xf32>
    %198 = arith.maximumf %197, %196 : vector<1x128xf32>
    %199 = vector.broadcast %cst_56 : f32 to vector<1x128xf32>
    %200 = arith.minimumf %199, %198 : vector<1x128xf32>
    %201 = arith.mulf %140, %195 : vector<1x128xf32>
    %cst_57 = arith.constant 0.000000e+00 : f32
    %cst_58 = arith.constant 1.500000e+01 : f32
    %202 = vector.broadcast %cst_57 : f32 to vector<1x128xf32>
    %203 = arith.maximumf %202, %201 : vector<1x128xf32>
    %204 = vector.broadcast %cst_58 : f32 to vector<1x128xf32>
    %205 = arith.minimumf %204, %203 : vector<1x128xf32>
    %206 = math.floor %200 : vector<1x128xf32>
    %207 = math.floor %205 : vector<1x128xf32>
    %208 = arith.subf %200, %206 : vector<1x128xf32>
    %209 = arith.subf %205, %207 : vector<1x128xf32>
    %cst_59 = arith.constant 1.000000e+00 : f32
    %210 = vector.broadcast %cst_59 : f32 to vector<1x128xf32>
    %211 = arith.subf %210, %208 : vector<1x128xf32>
    %cst_60 = arith.constant 1.000000e+00 : f32
    %212 = vector.broadcast %cst_60 : f32 to vector<1x128xf32>
    %213 = arith.subf %212, %209 : vector<1x128xf32>
    %214 = arith.fptosi %206 : vector<1x128xf32> to vector<1x128xi32>
    %215 = arith.fptosi %207 : vector<1x128xf32> to vector<1x128xi32>
    %c1_i32_61 = arith.constant 1 : i32
    %216 = vector.broadcast %c1_i32_61 : i32 to vector<1x128xi32>
    %217 = arith.addi %214, %216 : vector<1x128xi32>
    %c15_i32_62 = arith.constant 15 : i32
    %218 = vector.broadcast %c15_i32_62 : i32 to vector<1x128xi32>
    %219 = arith.minsi %217, %218 : vector<1x128xi32>
    %c1_i32_63 = arith.constant 1 : i32
    %220 = vector.broadcast %c1_i32_63 : i32 to vector<1x128xi32>
    %221 = arith.addi %215, %220 : vector<1x128xi32>
    %c15_i32_64 = arith.constant 15 : i32
    %222 = vector.broadcast %c15_i32_64 : i32 to vector<1x128xi32>
    %223 = arith.minsi %221, %222 : vector<1x128xi32>
    %224 = tpu.iota {dimensions = array<i32: 0>} : vector<16x128xi32>
    %225 = tpu.iota {dimensions = array<i32: 0>} : vector<16x128xi32>
    %226 = vector.broadcast %214 : vector<1x128xi32> to vector<16x128xi32>
    %227 = arith.cmpi eq, %224, %226 : vector<16x128xi32>
    %cst_65 = arith.constant 0.000000e+00 : f32
    %228 = vector.shape_cast %211 : vector<1x128xf32> to vector<1x128xf32>
    %229 = vector.broadcast %228 : vector<1x128xf32> to vector<16x128xf32>
    %230 = vector.broadcast %cst_65 : f32 to vector<16x128xf32>
    %231 = arith.select %227, %229, %230 : vector<16x128xi1>, vector<16x128xf32>
    %232 = vector.broadcast %219 : vector<1x128xi32> to vector<16x128xi32>
    %233 = arith.cmpi eq, %224, %232 : vector<16x128xi32>
    %cst_66 = arith.constant 0.000000e+00 : f32
    %234 = vector.shape_cast %208 : vector<1x128xf32> to vector<1x128xf32>
    %235 = vector.broadcast %234 : vector<1x128xf32> to vector<16x128xf32>
    %236 = vector.broadcast %cst_66 : f32 to vector<16x128xf32>
    %237 = arith.select %233, %235, %236 : vector<16x128xi1>, vector<16x128xf32>
    %238 = arith.addf %231, %237 : vector<16x128xf32>
    %239 = arith.truncf %238 : vector<16x128xf32> to vector<16x128xbf16>
    %240 = vector.broadcast %215 : vector<1x128xi32> to vector<16x128xi32>
    %241 = arith.cmpi eq, %225, %240 : vector<16x128xi32>
    %cst_67 = arith.constant 0.000000e+00 : f32
    %242 = vector.shape_cast %213 : vector<1x128xf32> to vector<1x128xf32>
    %243 = vector.broadcast %242 : vector<1x128xf32> to vector<16x128xf32>
    %244 = vector.broadcast %cst_67 : f32 to vector<16x128xf32>
    %245 = arith.select %241, %243, %244 : vector<16x128xi1>, vector<16x128xf32>
    %246 = vector.broadcast %223 : vector<1x128xi32> to vector<16x128xi32>
    %247 = arith.cmpi eq, %225, %246 : vector<16x128xi32>
    %cst_68 = arith.constant 0.000000e+00 : f32
    %248 = vector.shape_cast %209 : vector<1x128xf32> to vector<1x128xf32>
    %249 = vector.broadcast %248 : vector<1x128xf32> to vector<16x128xf32>
    %250 = vector.broadcast %cst_68 : f32 to vector<16x128xf32>
    %251 = arith.select %247, %249, %250 : vector<16x128xi1>, vector<16x128xf32>
    %252 = arith.addf %245, %251 : vector<16x128xf32>
    %c1_69 = arith.constant 1 : index
    %c0_70 = arith.constant 0 : index
    %c0_71 = arith.constant 0 : index
    %253 = vector.load %arg4[%c1_69, %c0_70, %c0_71] : memref<3x128x16xbf16, #tpu.memory_space<vmem>>, vector<1x128x16xbf16>
    %254 = vector.shape_cast %253 : vector<1x128x16xbf16> to vector<128x16xbf16>
    %cst_72 = arith.constant dense<0.000000e+00> : vector<128x128xf32>
    %255 = tpu.matmul %254, %239, %cst_72 {dimension_numbers = #tpu.dot_dimension_numbers<[1], [0], [0], [1], [0, 0, 1, 1], [], []>} : vector<128x16xbf16>, vector<16x128xbf16>, vector<128x128xf32> -> vector<128x128xf32>
    %256 = tpu.concatenate %252, %252, %252, %252, %252, %252, %252, %252 in 0 : vector<16x128xf32>, vector<16x128xf32>, vector<16x128xf32>, vector<16x128xf32>, vector<16x128xf32>, vector<16x128xf32>, vector<16x128xf32>, vector<16x128xf32> -> vector<128x128xf32>
    %257 = arith.mulf %255, %256 : vector<128x128xf32>
    %c0_73 = arith.constant 0 : index
    %c0_74 = arith.constant 0 : index
    %258 = vector.load %arg5[%c0_73, %c0_74] : memref<8x128xf32, #tpu.memory_space<vmem>>, vector<8x128xf32>
    %cst_75 = arith.constant dense<0.000000e+00> : vector<8x128xf32>
    %259 = tpu.matmul %258, %257, %cst_75 {dimension_numbers = #tpu.dot_dimension_numbers<[1], [0], [0], [1], [0, 0, 1, 1], [], []>} : vector<8x128xf32>, vector<128x128xf32>, vector<8x128xf32> -> vector<8x128xf32>
    %260 = vector.broadcast %188 : vector<1x128xf32> to vector<8x128xf32>
    %261 = arith.mulf %259, %260 : vector<8x128xf32>
    %262 = arith.mulf %141, %188 : vector<1x128xf32>
    %c2 = arith.constant 2 : index
    %c0_76 = arith.constant 0 : index
    %c0_77 = arith.constant 0 : index
    %263 = vector.load %arg2[%c2, %c0_76, %c0_77] : memref<3x6x4xf32, #tpu.memory_space<vmem>>, vector<1x6x4xf32>
    %264 = vector.shape_cast %263 : vector<1x6x4xf32> to vector<6x4xf32>
    %cst_78 = arith.constant dense<0.000000e+00> : vector<6x128xf32>
    %265 = tpu.matmul %264, %0, %cst_78 {dimension_numbers = #tpu.dot_dimension_numbers<[1], [0], [0], [1], [0, 0, 1, 1], [], []>} : vector<6x4xf32>, vector<4x128xf32>, vector<6x128xf32> -> vector<6x128xf32>
    %266 = vector.extract_strided_slice %265 {offsets = [0, 0], sizes = [1, 128], strides = [1, 1]} : vector<6x128xf32> to vector<1x128xf32>
    %267 = vector.extract_strided_slice %265 {offsets = [1, 0], sizes = [1, 128], strides = [1, 1]} : vector<6x128xf32> to vector<1x128xf32>
    %268 = vector.extract_strided_slice %265 {offsets = [2, 0], sizes = [1, 128], strides = [1, 1]} : vector<6x128xf32> to vector<1x128xf32>
    %c2_79 = arith.constant 2 : index
    %c0_80 = arith.constant 0 : index
    %c0_81 = arith.constant 0 : index
    %269 = vector.load %arg3[%c2_79, %c0_80, %c0_81] : memref<3x8x3xf32, #tpu.memory_space<vmem>>, vector<1x8x3xf32>
    %270 = vector.shape_cast %269 : vector<1x8x3xf32> to vector<8x3xf32>
    %271 = vector.extract_strided_slice %265 {offsets = [3, 0], sizes = [1, 128], strides = [1, 1]} : vector<6x128xf32> to vector<1x128xf32>
    %272 = vector.shape_cast %271 : vector<1x128xf32> to vector<1x128xf32>
    %273 = vector.broadcast %272 : vector<1x128xf32> to vector<8x128xf32>
    %274 = vector.extract_strided_slice %270 {offsets = [0, 0], sizes = [8, 1], strides = [1, 1]} : vector<8x3xf32> to vector<8x1xf32>
    %275 = vector.broadcast %274 : vector<8x1xf32> to vector<8x128xf32>
    %276 = arith.addf %273, %275 : vector<8x128xf32>
    %277 = vector.extract_strided_slice %265 {offsets = [4, 0], sizes = [1, 128], strides = [1, 1]} : vector<6x128xf32> to vector<1x128xf32>
    %278 = vector.shape_cast %277 : vector<1x128xf32> to vector<1x128xf32>
    %279 = vector.broadcast %278 : vector<1x128xf32> to vector<8x128xf32>
    %280 = vector.extract_strided_slice %270 {offsets = [0, 1], sizes = [8, 1], strides = [1, 1]} : vector<8x3xf32> to vector<8x1xf32>
    %281 = vector.broadcast %280 : vector<8x1xf32> to vector<8x128xf32>
    %282 = arith.addf %279, %281 : vector<8x128xf32>
    %283 = vector.extract_strided_slice %265 {offsets = [5, 0], sizes = [1, 128], strides = [1, 1]} : vector<6x128xf32> to vector<1x128xf32>
    %284 = vector.shape_cast %283 : vector<1x128xf32> to vector<1x128xf32>
    %285 = vector.broadcast %284 : vector<1x128xf32> to vector<8x128xf32>
    %286 = vector.extract_strided_slice %270 {offsets = [0, 2], sizes = [8, 1], strides = [1, 1]} : vector<8x3xf32> to vector<8x1xf32>
    %287 = vector.broadcast %286 : vector<8x1xf32> to vector<8x128xf32>
    %288 = arith.addf %285, %287 : vector<8x128xf32>
    %cst_82 = arith.constant 2.000000e+00 : f32
    %289 = vector.broadcast %cst_82 : f32 to vector<8x128xf32>
    %290 = arith.mulf %289, %276 : vector<8x128xf32>
    %cst_83 = arith.constant 6.300000e+01 : f32
    %291 = vector.broadcast %cst_83 : f32 to vector<8x128xf32>
    %292 = arith.mulf %291, %288 : vector<8x128xf32>
    %293 = arith.subf %290, %292 : vector<8x128xf32>
    %294 = math.absf %293 : vector<8x128xf32>
    %cst_84 = arith.constant 6.930000e+01 : f32
    %295 = vector.broadcast %cst_84 : f32 to vector<8x128xf32>
    %296 = arith.mulf %295, %288 : vector<8x128xf32>
    %297 = arith.cmpf ole, %294, %296 : vector<8x128xf32>
    %cst_85 = arith.constant 2.000000e+00 : f32
    %298 = vector.broadcast %cst_85 : f32 to vector<8x128xf32>
    %299 = arith.mulf %298, %282 : vector<8x128xf32>
    %cst_86 = arith.constant 6.300000e+01 : f32
    %300 = vector.broadcast %cst_86 : f32 to vector<8x128xf32>
    %301 = arith.mulf %300, %288 : vector<8x128xf32>
    %302 = arith.subf %299, %301 : vector<8x128xf32>
    %303 = math.absf %302 : vector<8x128xf32>
    %cst_87 = arith.constant 6.930000e+01 : f32
    %304 = vector.broadcast %cst_87 : f32 to vector<8x128xf32>
    %305 = arith.mulf %304, %288 : vector<8x128xf32>
    %306 = arith.cmpf ole, %303, %305 : vector<8x128xf32>
    %307 = arith.andi %297, %306 : vector<8x128xi1>
    %cst_88 = arith.constant 0.000000e+00 : f32
    %308 = vector.broadcast %cst_88 : f32 to vector<8x128xf32>
    %309 = arith.cmpf ogt, %288, %308 : vector<8x128xf32>
    %310 = arith.andi %307, %309 : vector<8x128xi1>
    %311 = arith.extui %310 : vector<8x128xi1> to vector<8x128xi32>
    %312 = arith.sitofp %311 : vector<8x128xi32> to vector<8x128xf32>
    %cst_89 = arith.constant dense<0xFF800000> : vector<128xf32>
    %313 = vector.multi_reduction <maximumf>, %312, %cst_89 [0] : vector<8x128xf32> to vector<128xf32>
    %314 = vector.shape_cast %313 : vector<128xf32> to vector<1x128xf32>
    %315 = arith.mulf %314, %8 : vector<1x128xf32>
    %316 = math.absf %268 : vector<1x128xf32>
    %cst_90 = arith.constant 1.000000e-10 : f32
    %317 = vector.broadcast %cst_90 : f32 to vector<1x128xf32>
    %318 = arith.cmpf ogt, %316, %317 : vector<1x128xf32>
    %cst_91 = arith.constant 1.000000e-10 : f32
    %319 = vector.broadcast %cst_91 : f32 to vector<1x128xf32>
    %320 = arith.select %318, %268, %319 : vector<1x128xi1>, vector<1x128xf32>
    %cst_92 = arith.constant 1.000000e+00 : f32
    %321 = vector.broadcast %cst_92 : f32 to vector<1x128xf32>
    %322 = arith.divf %321, %320 : vector<1x128xf32>
    %323 = arith.mulf %266, %322 : vector<1x128xf32>
    %cst_93 = arith.constant 0.000000e+00 : f32
    %cst_94 = arith.constant 1.500000e+01 : f32
    %324 = vector.broadcast %cst_93 : f32 to vector<1x128xf32>
    %325 = arith.maximumf %324, %323 : vector<1x128xf32>
    %326 = vector.broadcast %cst_94 : f32 to vector<1x128xf32>
    %327 = arith.minimumf %326, %325 : vector<1x128xf32>
    %328 = arith.mulf %267, %322 : vector<1x128xf32>
    %cst_95 = arith.constant 0.000000e+00 : f32
    %cst_96 = arith.constant 1.500000e+01 : f32
    %329 = vector.broadcast %cst_95 : f32 to vector<1x128xf32>
    %330 = arith.maximumf %329, %328 : vector<1x128xf32>
    %331 = vector.broadcast %cst_96 : f32 to vector<1x128xf32>
    %332 = arith.minimumf %331, %330 : vector<1x128xf32>
    %333 = math.floor %327 : vector<1x128xf32>
    %334 = math.floor %332 : vector<1x128xf32>
    %335 = arith.subf %327, %333 : vector<1x128xf32>
    %336 = arith.subf %332, %334 : vector<1x128xf32>
    %cst_97 = arith.constant 1.000000e+00 : f32
    %337 = vector.broadcast %cst_97 : f32 to vector<1x128xf32>
    %338 = arith.subf %337, %335 : vector<1x128xf32>
    %cst_98 = arith.constant 1.000000e+00 : f32
    %339 = vector.broadcast %cst_98 : f32 to vector<1x128xf32>
    %340 = arith.subf %339, %336 : vector<1x128xf32>
    %341 = arith.fptosi %333 : vector<1x128xf32> to vector<1x128xi32>
    %342 = arith.fptosi %334 : vector<1x128xf32> to vector<1x128xi32>
    %c1_i32_99 = arith.constant 1 : i32
    %343 = vector.broadcast %c1_i32_99 : i32 to vector<1x128xi32>
    %344 = arith.addi %341, %343 : vector<1x128xi32>
    %c15_i32_100 = arith.constant 15 : i32
    %345 = vector.broadcast %c15_i32_100 : i32 to vector<1x128xi32>
    %346 = arith.minsi %344, %345 : vector<1x128xi32>
    %c1_i32_101 = arith.constant 1 : i32
    %347 = vector.broadcast %c1_i32_101 : i32 to vector<1x128xi32>
    %348 = arith.addi %342, %347 : vector<1x128xi32>
    %c15_i32_102 = arith.constant 15 : i32
    %349 = vector.broadcast %c15_i32_102 : i32 to vector<1x128xi32>
    %350 = arith.minsi %348, %349 : vector<1x128xi32>
    %351 = tpu.iota {dimensions = array<i32: 0>} : vector<16x128xi32>
    %352 = tpu.iota {dimensions = array<i32: 0>} : vector<16x128xi32>
    %353 = vector.broadcast %341 : vector<1x128xi32> to vector<16x128xi32>
    %354 = arith.cmpi eq, %351, %353 : vector<16x128xi32>
    %cst_103 = arith.constant 0.000000e+00 : f32
    %355 = vector.shape_cast %338 : vector<1x128xf32> to vector<1x128xf32>
    %356 = vector.broadcast %355 : vector<1x128xf32> to vector<16x128xf32>
    %357 = vector.broadcast %cst_103 : f32 to vector<16x128xf32>
    %358 = arith.select %354, %356, %357 : vector<16x128xi1>, vector<16x128xf32>
    %359 = vector.broadcast %346 : vector<1x128xi32> to vector<16x128xi32>
    %360 = arith.cmpi eq, %351, %359 : vector<16x128xi32>
    %cst_104 = arith.constant 0.000000e+00 : f32
    %361 = vector.shape_cast %335 : vector<1x128xf32> to vector<1x128xf32>
    %362 = vector.broadcast %361 : vector<1x128xf32> to vector<16x128xf32>
    %363 = vector.broadcast %cst_104 : f32 to vector<16x128xf32>
    %364 = arith.select %360, %362, %363 : vector<16x128xi1>, vector<16x128xf32>
    %365 = arith.addf %358, %364 : vector<16x128xf32>
    %366 = arith.truncf %365 : vector<16x128xf32> to vector<16x128xbf16>
    %367 = vector.broadcast %342 : vector<1x128xi32> to vector<16x128xi32>
    %368 = arith.cmpi eq, %352, %367 : vector<16x128xi32>
    %cst_105 = arith.constant 0.000000e+00 : f32
    %369 = vector.shape_cast %340 : vector<1x128xf32> to vector<1x128xf32>
    %370 = vector.broadcast %369 : vector<1x128xf32> to vector<16x128xf32>
    %371 = vector.broadcast %cst_105 : f32 to vector<16x128xf32>
    %372 = arith.select %368, %370, %371 : vector<16x128xi1>, vector<16x128xf32>
    %373 = vector.broadcast %350 : vector<1x128xi32> to vector<16x128xi32>
    %374 = arith.cmpi eq, %352, %373 : vector<16x128xi32>
    %cst_106 = arith.constant 0.000000e+00 : f32
    %375 = vector.shape_cast %336 : vector<1x128xf32> to vector<1x128xf32>
    %376 = vector.broadcast %375 : vector<1x128xf32> to vector<16x128xf32>
    %377 = vector.broadcast %cst_106 : f32 to vector<16x128xf32>
    %378 = arith.select %374, %376, %377 : vector<16x128xi1>, vector<16x128xf32>
    %379 = arith.addf %372, %378 : vector<16x128xf32>
    %c2_107 = arith.constant 2 : index
    %c0_108 = arith.constant 0 : index
    %c0_109 = arith.constant 0 : index
    %380 = vector.load %arg4[%c2_107, %c0_108, %c0_109] : memref<3x128x16xbf16, #tpu.memory_space<vmem>>, vector<1x128x16xbf16>
    %381 = vector.shape_cast %380 : vector<1x128x16xbf16> to vector<128x16xbf16>
    %cst_110 = arith.constant dense<0.000000e+00> : vector<128x128xf32>
    %382 = tpu.matmul %381, %366, %cst_110 {dimension_numbers = #tpu.dot_dimension_numbers<[1], [0], [0], [1], [0, 0, 1, 1], [], []>} : vector<128x16xbf16>, vector<16x128xbf16>, vector<128x128xf32> -> vector<128x128xf32>
    %383 = tpu.concatenate %379, %379, %379, %379, %379, %379, %379, %379 in 0 : vector<16x128xf32>, vector<16x128xf32>, vector<16x128xf32>, vector<16x128xf32>, vector<16x128xf32>, vector<16x128xf32>, vector<16x128xf32>, vector<16x128xf32> -> vector<128x128xf32>
    %384 = arith.mulf %382, %383 : vector<128x128xf32>
    %c0_111 = arith.constant 0 : index
    %c0_112 = arith.constant 0 : index
    %385 = vector.load %arg5[%c0_111, %c0_112] : memref<8x128xf32, #tpu.memory_space<vmem>>, vector<8x128xf32>
    %cst_113 = arith.constant dense<0.000000e+00> : vector<8x128xf32>
    %386 = tpu.matmul %385, %384, %cst_113 {dimension_numbers = #tpu.dot_dimension_numbers<[1], [0], [0], [1], [0, 0, 1, 1], [], []>} : vector<8x128xf32>, vector<128x128xf32>, vector<8x128xf32> -> vector<8x128xf32>
    %387 = vector.broadcast %315 : vector<1x128xf32> to vector<8x128xf32>
    %388 = arith.mulf %386, %387 : vector<8x128xf32>
    %389 = arith.mulf %268, %315 : vector<1x128xf32>
    %390 = arith.mulf %134, %134 : vector<8x128xf32>
    %cst_114 = arith.constant dense<0.000000e+00> : vector<128xf32>
    %391 = vector.multi_reduction <add>, %390, %cst_114 [0] : vector<8x128xf32> to vector<128xf32>
    %392 = vector.shape_cast %391 : vector<128xf32> to vector<1x128xf32>
    %cst_115 = arith.constant 9.99999968E-21 : f32
    %393 = vector.broadcast %cst_115 : f32 to vector<1x128xf32>
    %394 = arith.addf %392, %393 : vector<1x128xf32>
    %395 = math.rsqrt %394 : vector<1x128xf32>
    %396 = vector.broadcast %395 : vector<1x128xf32> to vector<8x128xf32>
    %397 = arith.mulf %134, %396 : vector<8x128xf32>
    %398 = arith.mulf %261, %261 : vector<8x128xf32>
    %cst_116 = arith.constant dense<0.000000e+00> : vector<128xf32>
    %399 = vector.multi_reduction <add>, %398, %cst_116 [0] : vector<8x128xf32> to vector<128xf32>
    %400 = vector.shape_cast %399 : vector<128xf32> to vector<1x128xf32>
    %cst_117 = arith.constant 9.99999968E-21 : f32
    %401 = vector.broadcast %cst_117 : f32 to vector<1x128xf32>
    %402 = arith.addf %400, %401 : vector<1x128xf32>
    %403 = math.rsqrt %402 : vector<1x128xf32>
    %404 = vector.broadcast %403 : vector<1x128xf32> to vector<8x128xf32>
    %405 = arith.mulf %261, %404 : vector<8x128xf32>
    %406 = arith.mulf %388, %388 : vector<8x128xf32>
    %cst_118 = arith.constant dense<0.000000e+00> : vector<128xf32>
    %407 = vector.multi_reduction <add>, %406, %cst_118 [0] : vector<8x128xf32> to vector<128xf32>
    %408 = vector.shape_cast %407 : vector<128xf32> to vector<1x128xf32>
    %cst_119 = arith.constant 9.99999968E-21 : f32
    %409 = vector.broadcast %cst_119 : f32 to vector<1x128xf32>
    %410 = arith.addf %408, %409 : vector<1x128xf32>
    %411 = math.rsqrt %410 : vector<1x128xf32>
    %412 = vector.broadcast %411 : vector<1x128xf32> to vector<8x128xf32>
    %413 = arith.mulf %388, %412 : vector<8x128xf32>
    %414 = arith.mulf %397, %405 : vector<8x128xf32>
    %cst_120 = arith.constant dense<0.000000e+00> : vector<128xf32>
    %415 = vector.multi_reduction <add>, %414, %cst_120 [0] : vector<8x128xf32> to vector<128xf32>
    %416 = vector.shape_cast %415 : vector<128xf32> to vector<1x128xf32>
    %417 = arith.mulf %397, %413 : vector<8x128xf32>
    %cst_121 = arith.constant dense<0.000000e+00> : vector<128xf32>
    %418 = vector.multi_reduction <add>, %417, %cst_121 [0] : vector<8x128xf32> to vector<128xf32>
    %419 = vector.shape_cast %418 : vector<128xf32> to vector<1x128xf32>
    %420 = arith.mulf %405, %413 : vector<8x128xf32>
    %cst_122 = arith.constant dense<0.000000e+00> : vector<128xf32>
    %421 = vector.multi_reduction <add>, %420, %cst_122 [0] : vector<8x128xf32> to vector<128xf32>
    %422 = vector.shape_cast %421 : vector<128xf32> to vector<1x128xf32>
    %423 = tpu.concatenate %416, %419, %416, %422, %419, %422 in 0 : vector<1x128xf32>, vector<1x128xf32>, vector<1x128xf32>, vector<1x128xf32>, vector<1x128xf32>, vector<1x128xf32> -> vector<6x128xf32>
    %424 = arith.addf %61, %188 : vector<1x128xf32>
    %425 = arith.addf %135, %262 : vector<1x128xf32>
    %426 = arith.addf %424, %315 : vector<1x128xf32>
    %427 = arith.addf %425, %389 : vector<1x128xf32>
    %cst_123 = arith.constant 1.000000e-10 : f32
    %428 = vector.broadcast %cst_123 : f32 to vector<1x128xf32>
    %429 = arith.addf %426, %428 : vector<1x128xf32>
    %430 = arith.divf %427, %429 : vector<1x128xf32>
    %c0_124 = arith.constant 0 : index
    %c0_125 = arith.constant 0 : index
    %431 = vector.load %arg6[%c0_124, %c0_125] : memref<32x6xf32, #tpu.memory_space<vmem>>, vector<32x6xf32>
    %cst_126 = arith.constant dense<0.000000e+00> : vector<32x128xf32>
    %432 = tpu.matmul %431, %423, %cst_126 {dimension_numbers = #tpu.dot_dimension_numbers<[1], [0], [0], [1], [0, 0, 1, 1], [], []>} : vector<32x6xf32>, vector<6x128xf32>, vector<32x128xf32> -> vector<32x128xf32>
    %c0_127 = arith.constant 0 : index
    %c0_128 = arith.constant 0 : index
    %433 = vector.load %arg7[%c0_127, %c0_128] : memref<32x1xf32, #tpu.memory_space<vmem>>, vector<32x1xf32>
    %434 = vector.broadcast %433 : vector<32x1xf32> to vector<32x128xf32>
    %435 = arith.addf %432, %434 : vector<32x128xf32>
    %cst_129 = arith.constant 0.000000e+00 : f32
    %436 = vector.broadcast %cst_129 : f32 to vector<32x128xf32>
    %437 = arith.maximumf %435, %436 : vector<32x128xf32>
    %c0_130 = arith.constant 0 : index
    %c0_131 = arith.constant 0 : index
    %438 = vector.load %arg8[%c0_130, %c0_131] : memref<3x32xf32, #tpu.memory_space<vmem>>, vector<3x32xf32>
    %cst_132 = arith.constant dense<0.000000e+00> : vector<3x128xf32>
    %439 = tpu.matmul %438, %437, %cst_132 {dimension_numbers = #tpu.dot_dimension_numbers<[1], [0], [0], [1], [0, 0, 1, 1], [], []>} : vector<3x32xf32>, vector<32x128xf32>, vector<3x128xf32> -> vector<3x128xf32>
    %c0_133 = arith.constant 0 : index
    %c0_134 = arith.constant 0 : index
    %440 = vector.load %arg9[%c0_133, %c0_134] : memref<3x1xf32, #tpu.memory_space<vmem>>, vector<3x1xf32>
    %441 = vector.broadcast %440 : vector<3x1xf32> to vector<3x128xf32>
    %442 = arith.addf %439, %441 : vector<3x128xf32>
    %cst_135 = arith.constant 0.000000e+00 : f32
    %443 = vector.broadcast %cst_135 : f32 to vector<3x128xf32>
    %444 = arith.subf %443, %442 : vector<3x128xf32>
    %445 = math.exp %444 : vector<3x128xf32>
    %cst_136 = arith.constant 1.000000e+00 : f32
    %446 = vector.broadcast %cst_136 : f32 to vector<3x128xf32>
    %447 = arith.addf %446, %445 : vector<3x128xf32>
    %448 = tpu.reciprocal %447 {approx = true} : vector<3x128xf32> -> vector<3x128xf32>
    %449 = tpu.concatenate %61, %188, %315 in 0 : vector<1x128xf32>, vector<1x128xf32>, vector<1x128xf32> -> vector<3x128xf32>
    %450 = arith.mulf %448, %449 : vector<3x128xf32>
    %451 = vector.extract_strided_slice %450 {offsets = [0, 0], sizes = [1, 128], strides = [1, 1]} : vector<3x128xf32> to vector<1x128xf32>
    %452 = vector.broadcast %451 : vector<1x128xf32> to vector<8x128xf32>
    %453 = arith.mulf %134, %452 : vector<8x128xf32>
    %454 = vector.extract_strided_slice %450 {offsets = [1, 0], sizes = [1, 128], strides = [1, 1]} : vector<3x128xf32> to vector<1x128xf32>
    %455 = vector.broadcast %454 : vector<1x128xf32> to vector<8x128xf32>
    %456 = arith.mulf %261, %455 : vector<8x128xf32>
    %457 = arith.addf %453, %456 : vector<8x128xf32>
    %458 = vector.extract_strided_slice %450 {offsets = [2, 0], sizes = [1, 128], strides = [1, 1]} : vector<3x128xf32> to vector<1x128xf32>
    %459 = vector.broadcast %458 : vector<1x128xf32> to vector<8x128xf32>
    %460 = arith.mulf %388, %459 : vector<8x128xf32>
    %461 = arith.addf %457, %460 : vector<8x128xf32>
    %c0_137 = arith.constant 0 : index
    %c0_138 = arith.constant 0 : index
    %462 = vector.load %arg10[%c0_137, %c0_138] : memref<8x128xf32, #tpu.memory_space<vmem>>, vector<8x128xf32>
    tpu.vector_store %arg10[%c0_137, %c0_138], %461 {strides = array<i32>} : memref<8x128xf32, #tpu.memory_space<vmem>>, vector<8x128xf32>,
    %c0_139 = arith.constant 0 : index
    %c0_140 = arith.constant 0 : index
    %463 = vector.load %arg11[%c0_139, %c0_140] : memref<1x128xf32, #tpu.memory_space<vmem>>, vector<1x128xf32>
    tpu.vector_store %arg11[%c0_139, %c0_140], %430 {strides = array<i32>} : memref<1x128xf32, #tpu.memory_space<vmem>>, vector<1x128xf32>,
    %c0_141 = arith.constant 0 : index
    %c0_142 = arith.constant 0 : index
    %464 = vector.load %arg12[%c0_141, %c0_142] : memref<3x128xf32, #tpu.memory_space<vmem>>, vector<3x128xf32>
    tpu.vector_store %arg12[%c0_141, %c0_142], %450 {strides = array<i32>} : memref<3x128xf32, #tpu.memory_space<vmem>>, vector<3x128xf32>,
    %c0_143 = arith.constant 0 : index
    %c0_144 = arith.constant 0 : index
    %465 = vector.load %arg13[%c0_143, %c0_144] : memref<1x128xf32, #tpu.memory_space<vmem>>, vector<1x128xf32>
    tpu.vector_store %arg13[%c0_143, %c0_144], %426 {strides = array<i32>} : memref<1x128xf32, #tpu.memory_space<vmem>>, vector<1x128xf32>,
    return
  }
  func.func @transform_0(%arg0: i32) -> (i32, i32) {
    %c0_i32 = arith.constant 0 : i32
    %c0_i32_0 = arith.constant 0 : i32
    return %c0_i32, %arg0 : i32, i32
  }
  func.func @transform_1(%arg0: i32) -> (i32, i32, i32) {
    %c0_i32 = arith.constant 0 : i32
    %c0_i32_0 = arith.constant 0 : i32
    %c0_i32_1 = arith.constant 0 : i32
    %c0_i32_2 = arith.constant 0 : i32
    return %c0_i32, %c0_i32_0, %c0_i32_1 : i32, i32, i32
  }
  func.func @transform_2(%arg0: i32) -> (i32, i32, i32) {
    %c0_i32 = arith.constant 0 : i32
    %c0_i32_0 = arith.constant 0 : i32
    %c0_i32_1 = arith.constant 0 : i32
    %c0_i32_2 = arith.constant 0 : i32
    return %c0_i32, %c0_i32_0, %c0_i32_1 : i32, i32, i32
  }
  func.func @transform_3(%arg0: i32) -> (i32, i32, i32) {
    %c0_i32 = arith.constant 0 : i32
    %c0_i32_0 = arith.constant 0 : i32
    %c0_i32_1 = arith.constant 0 : i32
    %c0_i32_2 = arith.constant 0 : i32
    return %c0_i32, %c0_i32_0, %c0_i32_1 : i32, i32, i32
  }
  func.func @transform_4(%arg0: i32) -> (i32, i32) {
    %c0_i32 = arith.constant 0 : i32
    %c0_i32_0 = arith.constant 0 : i32
    %c0_i32_1 = arith.constant 0 : i32
    return %c0_i32, %c0_i32_0 : i32, i32
  }
  func.func @transform_5(%arg0: i32) -> (i32, i32) {
    %c0_i32 = arith.constant 0 : i32
    %c0_i32_0 = arith.constant 0 : i32
    %c0_i32_1 = arith.constant 0 : i32
    return %c0_i32, %c0_i32_0 : i32, i32
  }
  func.func @transform_6(%arg0: i32) -> (i32, i32) {
    %c0_i32 = arith.constant 0 : i32
    %c0_i32_0 = arith.constant 0 : i32
    %c0_i32_1 = arith.constant 0 : i32
    return %c0_i32, %c0_i32_0 : i32, i32
  }
  func.func @transform_7(%arg0: i32) -> (i32, i32) {
    %c0_i32 = arith.constant 0 : i32
    %c0_i32_0 = arith.constant 0 : i32
    %c0_i32_1 = arith.constant 0 : i32
    return %c0_i32, %c0_i32_0 : i32, i32
  }
  func.func @transform_8(%arg0: i32) -> (i32, i32) {
    %c0_i32 = arith.constant 0 : i32
    %c0_i32_0 = arith.constant 0 : i32
    %c0_i32_1 = arith.constant 0 : i32
    return %c0_i32, %c0_i32_0 : i32, i32
  }
  func.func @transform_9(%arg0: i32) -> (i32, i32) {
    %c0_i32 = arith.constant 0 : i32
    %c0_i32_0 = arith.constant 0 : i32
    return %c0_i32, %arg0 : i32, i32
  }
  func.func @transform_10(%arg0: i32) -> (i32, i32) {
    %c0_i32 = arith.constant 0 : i32
    %c0_i32_0 = arith.constant 0 : i32
    return %c0_i32, %arg0 : i32, i32
  }
  func.func @transform_11(%arg0: i32) -> (i32, i32) {
    %c0_i32 = arith.constant 0 : i32
    %c0_i32_0 = arith.constant 0 : i32
    return %c0_i32, %arg0 : i32, i32
  }
  func.func @transform_12(%arg0: i32) -> (i32, i32) {
    %c0_i32 = arith.constant 0 : i32
    %c0_i32_0 = arith.constant 0 : i32
    return %c0_i32, %arg0 : i32, i32
  }
}

</mosaic_0001>

<llo_original>
// kernel: tpu_custom_call.1
$region0: #{tpu_custom_call.1}
  #allocation0 [shape = 'u32[]', space=smem, size = 0x4, offset = 0x4, fixed_abs, tag = 'smem constant byte address 0x4 - core index']
  #allocation1 [shape = 'u32[144,128]{1,0:T(1,128)}', space=vmem, size = 0x12000, scoped, tag = 'internal scratch']
  %s0 = inlined_call_operand.vmem [shape: f32[4,128], index: 0, kind: input, shape index: {}]
  %s1 = inlined_call_operand.vmem [shape: f32[3,6,4], index: 1, kind: input, shape index: {}]
  %s2 = inlined_call_operand.vmem [shape: f32[3,8,3], index: 2, kind: input, shape index: {}]
  %s3 = inlined_call_operand.vmem [shape: bf16[3,128,16], index: 3, kind: input, shape index: {}]
  %s4 = inlined_call_operand.vmem [shape: f32[8,128], index: 4, kind: input, shape index: {}]
  %s5 = inlined_call_operand.vmem [shape: f32[32,6], index: 5, kind: input, shape index: {}]
  %s6 = inlined_call_operand.vmem [shape: f32[32,1], index: 6, kind: input, shape index: {}]
  %s7 = inlined_call_operand.vmem [shape: f32[3,32], index: 7, kind: input, shape index: {}]
  %s8 = inlined_call_operand.vmem [shape: f32[3,1], index: 8, kind: input, shape index: {}]
  %s9 = inlined_call_operand.hbm [shape: f32[8,128], index: 9, kind: output, shape index: {0}]
  %s10 = inlined_call_operand.hbm [shape: f32[1,128], index: 10, kind: output, shape index: {1}]
  %s11 = inlined_call_operand.hbm [shape: f32[3,128], index: 11, kind: output, shape index: {2}]
  %s12 = inlined_call_operand.hbm [shape: f32[1,128], index: 12, kind: output, shape index: {3}]
  %13 = xla_tuple %s9, %s10, %s11, %s12
  %s14 = sld [smem:[#allocation0]]
  $region70: #{tpu_custom_call.1} parent=0
    _
  %s16 = ssub.s32 1, %s14
  %s17 = scalar_select 0, %s16, %s14
  $region1: #{tpu_custom_call.1} parent=0
    #allocation2 [shape = 'u8[4096]{0}', space=vmem, size = 0x1000, scoped, tag = 'output window, operand 0, single buffered']
    #allocation3 [shape = 's32[1]{0}', space=sflag, size = 0x4, scoped, tag = 'scoped memory for tpu_custom_call.1']
    #allocation4 [shape = 'u8[512]{0}', space=vmem, size = 0x400, scoped, tag = 'output window, operand 1, single buffered']
    #allocation5 [shape = 's32[1]{0}', space=sflag, size = 0x4, scoped, tag = 'scoped memory for tpu_custom_call.1']
    #allocation6 [shape = 'u8[2048]{0}', space=vmem, size = 0x800, scoped, tag = 'output window, operand 2, single buffered']
    #allocation7 [shape = 'u8[512]{0}', space=vmem, size = 0x400, scoped, tag = 'output window, operand 3, single buffered']
    #allocation8 [shape = 's32[1]{0}', space=sflag, size = 0x4, scoped, tag = 'scoped memory for tpu_custom_call.1']
    %18 = vsyncpa [#allocation3], 0
    %19 = vsyncpa [#allocation5], 0
    %20 = vsyncpa [#allocation8], 0
    // Predicated region
    $region2: #{tpu_custom_call.1} parent=1 // pred_check
      _
    $region3: #{tpu_custom_call.1} parent=1 // pred_check_branch
      %22 = sbr.rel (0) target = $region5
    $region4: #{tpu_custom_call.1} parent=1 // pred_region
      _
    $region5: #{tpu_custom_call.1} parent=1 // pred_fallthru
      _
    // Predicated region
    $region6: #{tpu_custom_call.1} parent=1 // pred_check
      _
    $region7: #{tpu_custom_call.1} parent=1 // pred_check_branch
      %24 = sbr.rel (0) target = $region9
    $region8: #{tpu_custom_call.1} parent=1 // pred_region
      _
    $region9: #{tpu_custom_call.1} parent=1 // pred_fallthru
      _
    // Predicated region
    $region10: #{tpu_custom_call.1} parent=1 // pred_check
      _
    $region11: #{tpu_custom_call.1} parent=1 // pred_check_branch
      %26 = sbr.rel (0) target = $region13
    $region12: #{tpu_custom_call.1} parent=1 // pred_region
      _
    $region13: #{tpu_custom_call.1} parent=1 // pred_fallthru
      _
    // Predicated region
    $region14: #{tpu_custom_call.1} parent=1 // pred_check
      _
    $region15: #{tpu_custom_call.1} parent=1 // pred_check_branch
      %28 = sbr.rel (0) target = $region17
    $region16: #{tpu_custom_call.1} parent=1 // pred_region
      _
    $region17: #{tpu_custom_call.1} parent=1 // pred_fallthru
      _
    // Predicated region
    $region18: #{tpu_custom_call.1} parent=1 // pred_check
      _
    $region19: #{tpu_custom_call.1} parent=1 // pred_check_branch
      %30 = sbr.rel (0) target = $region21
    $region20: #{tpu_custom_call.1} parent=1 // pred_region
      _
    $region21: #{tpu_custom_call.1} parent=1 // pred_fallthru
      _
    // Predicated region
    $region22: #{tpu_custom_call.1} parent=1 // pred_check
      _
    $region23: #{tpu_custom_call.1} parent=1 // pred_check_branch
      %32 = sbr.rel (0) target = $region25
    $region24: #{tpu_custom_call.1} parent=1 // pred_region
      _
    $region25: #{tpu_custom_call.1} parent=1 // pred_fallthru
      _
    // Predicated region
    $region26: #{tpu_custom_call.1} parent=1 // pred_check
      _
    $region27: #{tpu_custom_call.1} parent=1 // pred_check_branch
      %34 = sbr.rel (0) target = $region29
    $region28: #{tpu_custom_call.1} parent=1 // pred_region
      _
    $region29: #{tpu_custom_call.1} parent=1 // pred_fallthru
      _
    // Predicated region
    $region30: #{tpu_custom_call.1} parent=1 // pred_check
      _
    $region31: #{tpu_custom_call.1} parent=1 // pred_check_branch
      %36 = sbr.rel (0) target = $region33
    $region32: #{tpu_custom_call.1} parent=1 // pred_region
      _
    $region33: #{tpu_custom_call.1} parent=1 // pred_fallthru
      _
    // Predicated region
    $region34: #{tpu_custom_call.1} parent=1 // pred_check
      _
    $region35: #{tpu_custom_call.1} parent=1 // pred_check_branch
      %38 = sbr.rel (0) target = $region37
    $region36: #{tpu_custom_call.1} parent=1 // pred_region
      _
    $region37: #{tpu_custom_call.1} parent=1 // pred_fallthru
      _
    %v40 = vld [vmem:[%s0] sm:$0xf]
    %v41 = vlaneseq
    %v42 = vand.u32 %v41, 127
    %s43 = smul.u32 0, 128
    %v44 = vstv %s43
    %v45 = vadd.s32 %v44, %v42
    %vm46 = vcmp.lt.s32.totalorder %v45, 128
    %v47 = vsel %vm46, 1, 0
    %v48 = vcvt.s32.f32 %v47
    %v49 = vld [vmem:[%s1] sm:$0x3f]
    %vm50 = vcmask 31744
    %v52 = vsel %vm50, %v49, 0
    %vm54 = vcmask 1043456
    %v56 = vsel %vm54, %v40, 0
    %58 = vmatprep.subr.mxu0 0.0
    %59 = vmatpush1.msra.mxu0 %v56
    %60 = vmatprep.subr.mxu0 0.0
    %61 = vmatpush1.msra.mxu0 0.0
    %62 = vmatprep.subr.mxu0 0.0
    %63 = vmatpush1.msra.mxu0 0.0
    %64 = vmatprep.subr.mxu0 0.0
    %65 = vmatpush1.msra.mxu0 0.0
    %66 = vmatprep.subr.mxu0 0.0
    %67 = vmatpush1.msra.mxu0 0.0
    %68 = vmatprep.subr.mxu0 0.0
    %69 = vmatpush1.msra.mxu0 0.0
    %70 = vmatprep.subr.mxu0 0.0
    %71 = vmatpush1.msra.mxu0 0.0
    %72 = vmatprep.subr.mxu0 0.0
    %73 = vmatpush1.msra.mxu0 0.0
    %74 = vmatprep.subr.mxu0 0.0
    %75 = vmatpush1.msra.mxu0 0.0
    %76 = vmatprep.subr.mxu0 0.0
    %77 = vmatpush1.msra.mxu0 0.0
    %78 = vmatprep.subr.mxu0 0.0
    %79 = vmatpush1.msra.mxu0 0.0
    %80 = vmatprep.subr.mxu0 0.0
    %81 = vmatpush1.msra.mxu0 0.0
    %82 = vmatprep.subr.mxu0 0.0
    %83 = vmatpush1.msra.mxu0 0.0
    %84 = vmatprep.subr.mxu0 0.0
    %85 = vmatpush1.msra.mxu0 0.0
    %86 = vmatprep.subr.mxu0 0.0
    %87 = vmatpush1.msra.mxu0 0.0
    %88 = vmatprep.subr.mxu0 0.0
    %89 = vmatpush1.msra.mxu0 0.0
    %90 = vmatprep.subr.mxu0 0.0
    %91 = vmatpush1.msra.mxu0 0.0
    %92 = vmatprep.subr.mxu0 0.0
    %93 = vmatpush1.msra.mxu0 0.0
    %94 = vmatprep.subr.mxu0 0.0
    %95 = vmatpush1.msra.mxu0 0.0
    %96 = vmatprep.subr.mxu0 0.0
    %97 = vmatpush1.msra.mxu0 0.0
    %98 = vmatprep.subr.mxu0 0.0
    %99 = vmatpush1.msra.mxu0 0.0
    %100 = vmatprep.subr.mxu0 0.0
    %101 = vmatpush1.msra.mxu0 0.0
    %102 = vmatprep.subr.mxu0 0.0
    %103 = vmatpush1.msra.mxu0 0.0
    %104 = vmatprep.subr.mxu0 0.0
    %105 = vmatpush1.msra.mxu0 0.0
    %106 = vmatprep.subr.mxu0 0.0
    %107 = vmatpush1.msra.mxu0 0.0
    %108 = vmatprep.subr.mxu0 0.0
    %109 = vmatpush1.msra.mxu0 0.0
    %110 = vmatprep.subr.mxu0 0.0
    %111 = vmatpush1.msra.mxu0 0.0
    %112 = vmatprep.subr.mxu0 0.0
    %113 = vmatpush1.msra.mxu0 0.0
    %114 = vmatprep.subr.mxu0 0.0
    %115 = vmatpush1.msra.mxu0 0.0
    %116 = vmatprep.subr.mxu0 0.0
    %117 = vmatpush1.msra.mxu0 0.0
    %118 = vmatprep.subr.mxu0 0.0
    %119 = vmatpush1.msra.mxu0 0.0
    %120 = vmatprep.subr.mxu0 0.0
    %121 = vmatpush1.msra.mxu0 0.0
    %122 = vmatprep.mubr.f32.mxu0 0.0
    %123 = vmatmul.mubr.f32.gmra.mrb[0].mxu0 %v52
    %v124 = vpop.f32.mrb[0].mxu0
    %v125 = vadd.f32 0.0, %v124
    %v126 = vpop.f32.mrb[0].mxu0
    %127 = vdwg.mxu0
    %v128 = vld [vmem:[%s2] sm:$0xff]
    %v129 = vlaneseq
    %v130 = vshrl.u32 %v129, 7
    %v131 = vsub.s32 3, %v130
    %v132 = vrot.slane %v125, %v131
    %134 = vset.pattern.permute.xlu0 0
    %135 = vperm.xlu0 %134, %v128
    %v136 = vpop.permute.xlu0 %135
    %v138 = vadd.f32 %v132, %v136
    %v139 = vlaneseq
    %v140 = vshrl.u32 %v139, 7
    %v141 = vsub.s32 4, %v140
    %v142 = vrot.slane %v125, %v141
    %143 = vset.pattern.permute.xlu0 1
    %144 = vperm.xlu0 %143, %v128
    %v145 = vpop.permute.xlu0 %144
    %v147 = vadd.f32 %v142, %v145
    %v148 = vlaneseq
    %v149 = vshrl.u32 %v148, 7
    %v150 = vsub.s32 5, %v149
    %v151 = vrot.slane %v125, %v150
    %152 = vset.pattern.permute.xlu0 2
    %153 = vperm.xlu0 %152, %v128
    %v154 = vpop.permute.xlu0 %153
    %v156 = vadd.f32 %v151, %v154
    %v157 = vmul.f32 %v138, 2.0
    %v158 = vmul.f32 %v156, 63.0
    %v159 = vsub.f32 %v157, %v158
    %v160 = vand.u32 2147483647, %v159
    %v161 = vmul.f32 %v156, 69.3
    %vm162 = vcmp.le.f32.partialorder %v160, %v161
    %v163 = vmul.f32 %v147, 2.0
    %v164 = vsub.f32 %v163, %v158
    %v165 = vand.u32 2147483647, %v164
    %vm166 = vcmp.le.f32.partialorder %v165, %v161
    %vm167 = vmand %vm162, %vm166
    %vm168 = vcmp.gt.f32.partialorder %v156, 0.0
    %vm169 = vmand %vm167, %vm168
    %v170 = vsel %vm169, 1, 0
    %v171 = vcvt.s32.f32 %v170
    %v172 = vrot.slane %v171, 4
    %v173 = vmax.f32 %v171, %v172
    %v174 = vrot.slane %v173, 2
    %v175 = vmax.f32 %v173, %v174
    %v176 = vrot.slane %v175, 1
    %v177 = vmax.f32 %v175, %v176
    %v178 = vmul.f32 %v177, %v48
    %v179 = vand.u32 2147483647, %v125
    %vm180 = vcmp.gt.f32.partialorder %v179, 1e-10
    %v181 = vsel %vm180, %v125, 1e-10
    %v182 = vrcp.pop %v181
    %v183 = vmul.f32 1.0, %v182
    %v185 = vrot.slane %v183, 2
    %v187 = vmul.f32 %v125, %v185
    %v188 = vmax.f32 %v187, 0.0
    %v189 = vmin.f32 %v188, 15.0
    %v190 = vrot.slane %v183, 1
    %v192 = vmul.f32 %v125, %v190
    %v193 = vmax.f32 %v192, 0.0
    %v194 = vmin.f32 %v193, 15.0
    %v195 = vfloor.f32 %v189
    %v196 = vfloor.f32 %v194
    %v197 = vsub.f32 %v189, %v195
    %v198 = vsub.f32 %v194, %v196
    %v199 = vsub.f32 1.0, %v197
    %v200 = vsub.f32 1.0, %v198
    %v201 = vcvt.f32.s32.to.zero.pseudo %v195
    %v202 = vcvt.f32.s32.to.zero.pseudo %v196
    %v203 = vadd.s32 %v201, 1
    %vm204 = vcmp.lt.s32.totalorder %v203, 15
    %v205 = vsel %vm204, %v203, 15
    %v206 = vadd.s32 %v202, 1
    %vm207 = vcmp.lt.s32.totalorder %v206, 15
    %v208 = vsel %vm207, %v206, 15
    %v209 = vlaneseq
    %v210 = vshrl.u32 %v209, 7
    %v211 = vadd.s32 %v210, 8
    %v212 = vlaneseq
    %v213 = vshrl.u32 %v212, 7
    %v214 = vsub.s32 0, %v213
    %v215 = vrot.slane %v201, %v214
    %vm216 = vcmp.eq.s32.totalorder %v210, %v215
    %vm217 = vcmp.eq.s32.totalorder %v211, %v215
    %v218 = vlaneseq
    %v219 = vshrl.u32 %v218, 7
    %v220 = vsub.s32 0, %v219
    %v221 = vrot.slane %v199, %v220
    %v222 = vsel %vm216, %v221, 0.0
    %v223 = vsel %vm217, %v221, 0.0
    %v224 = vlaneseq
    %v225 = vshrl.u32 %v224, 7
    %v226 = vsub.s32 0, %v225
    %v227 = vrot.slane %v205, %v226
    %vm228 = vcmp.eq.s32.totalorder %v210, %v227
    %vm229 = vcmp.eq.s32.totalorder %v211, %v227
    %v230 = vlaneseq
    %v231 = vshrl.u32 %v230, 7
    %v232 = vsub.s32 0, %v231
    %v233 = vrot.slane %v197, %v232
    %v234 = vsel %vm228, %v233, 0.0
    %v235 = vsel %vm229, %v233, 0.0
    %v236 = vadd.f32 %v222, %v234
    %v237 = vadd.f32 %v223, %v235
    %v238 = vpack.c.bf16 %v237, %v236
    %v239 = vlaneseq
    %v240 = vshrl.u32 %v239, 7
    %v241 = vsub.s32 1, %v240
    %v242 = vrot.slane %v202, %v241
    %vm243 = vcmp.eq.s32.totalorder %v210, %v242
    %vm244 = vcmp.eq.s32.totalorder %v211, %v242
    %v245 = vlaneseq
    %v246 = vshrl.u32 %v245, 7
    %v247 = vsub.s32 1, %v246
    %v248 = vrot.slane %v200, %v247
    %v249 = vsel %vm243, %v248, 0.0
    %v250 = vsel %vm244, %v248, 0.0
    %v251 = vlaneseq
    %v252 = vshrl.u32 %v251, 7
    %v253 = vsub.s32 1, %v252
    %v254 = vrot.slane %v208, %v253
    %vm255 = vcmp.eq.s32.totalorder %v210, %v254
    %vm256 = vcmp.eq.s32.totalorder %v211, %v254
    %v257 = vlaneseq
    %v258 = vshrl.u32 %v257, 7
    %v259 = vsub.s32 1, %v258
    %v260 = vrot.slane %v198, %v259
    %v261 = vsel %vm255, %v260, 0.0
    %v262 = vsel %vm256, %v260, 0.0
    %v263 = vadd.f32 %v249, %v261
    %v264 = vadd.f32 %v250, %v262
    %v265 = vld [vmem:[%s3] sm:$0xf]
    %v266 = vld [vmem:[%s3 + $0x4] sm:$0xf]
    %v267 = vld [vmem:[%s3 + $0x8] sm:$0xf]
    %v268 = vld [vmem:[%s3 + $0xc] sm:$0xf]
    %v269 = vld [vmem:[%s3 + $0x10] sm:$0xf]
    %v270 = vld [vmem:[%s3 + $0x14] sm:$0xf]
    %v271 = vld [vmem:[%s3 + $0x18] sm:$0xf]
    %v272 = vld [vmem:[%s3 + $0x1c] sm:$0xf]
    %v273 = vld [vmem:[%s3 + $0x20] sm:$0xf]
    %v274 = vld [vmem:[%s3 + $0x24] sm:$0xf]
    %v275 = vld [vmem:[%s3 + $0x28] sm:$0xf]
    %v276 = vld [vmem:[%s3 + $0x2c] sm:$0xf]
    %v277 = vld [vmem:[%s3 + $0x30] sm:$0xf]
    %v278 = vld [vmem:[%s3 + $0x34] sm:$0xf]
    %v279 = vld [vmem:[%s3 + $0x38] sm:$0xf]
    %v280 = vld [vmem:[%s3 + $0x3c] sm:$0xf]
    %v297 = vunpack.c.l.b16 %v265
    %v298 = vunpack.c.l.b16 %v266
    %v299 = vunpack.c.l.b16 %v267
    %v300 = vunpack.c.l.b16 %v268
    %v301 = vunpack.c.l.b16 %v269
    %v302 = vunpack.c.l.b16 %v270
    %v303 = vunpack.c.l.b16 %v271
    %v304 = vunpack.c.l.b16 %v272
    %v305 = vunpack.c.l.b16 %v273
    %v306 = vunpack.c.l.b16 %v274
    %v307 = vunpack.c.l.b16 %v275
    %v308 = vunpack.c.l.b16 %v276
    %v309 = vunpack.c.l.b16 %v277
    %v310 = vunpack.c.l.b16 %v278
    %v311 = vunpack.c.l.b16 %v279
    %v312 = vunpack.c.l.b16 %v280
    %v313 = vpack.c.b16 %v298, %v297
    %v314 = vpack.c.b16 %v300, %v299
    %v315 = vpack.c.b16 %v302, %v301
    %v316 = vpack.c.b16 %v304, %v303
    %v317 = vpack.c.b16 %v306, %v305
    %v318 = vpack.c.b16 %v308, %v307
    %v319 = vpack.c.b16 %v310, %v309
    %v320 = vpack.c.b16 %v312, %v311
    %vm321 = vcmask 130048
    %v323 = vsel %vm321, %v313, 0
    %v326 = vsel %vm321, %v314, 0
    %v329 = vsel %vm321, %v315, 0
    %v332 = vsel %vm321, %v316, 0
    %v335 = vsel %vm321, %v317, 0
    %v338 = vsel %vm321, %v318, 0
    %v341 = vsel %vm321, %v319, 0
    %v344 = vsel %vm321, %v320, 0
    %346 = vmatprep.subr.bf16.mxu0 0
    %347 = vmatpush1.bf16.msra.mxu0 %v238
    %348 = vmatprep.subr.bf16.mxu0 0
    %349 = vmatpush1.bf16.msra.mxu0 0
    %350 = vmatprep.subr.bf16.mxu0 0
    %351 = vmatpush1.bf16.msra.mxu0 0
    %352 = vmatprep.subr.bf16.mxu0 0
    %353 = vmatpush1.bf16.msra.mxu0 0
    %354 = vmatprep.subr.bf16.mxu0 0
    %355 = vmatpush1.bf16.msra.mxu0 0
    %356 = vmatprep.subr.bf16.mxu0 0
    %357 = vmatpush1.bf16.msra.mxu0 0
    %358 = vmatprep.subr.bf16.mxu0 0
    %359 = vmatpush1.bf16.msra.mxu0 0
    %360 = vmatprep.subr.bf16.mxu0 0
    %361 = vmatpush1.bf16.msra.mxu0 0
    %362 = vmatprep.subr.bf16.mxu0 0
    %363 = vmatpush1.bf16.msra.mxu0 0
    %364 = vmatprep.subr.bf16.mxu0 0
    %365 = vmatpush1.bf16.msra.mxu0 0
    %366 = vmatprep.subr.bf16.mxu0 0
    %367 = vmatpush1.bf16.msra.mxu0 0
    %368 = vmatprep.subr.bf16.mxu0 0
    %369 = vmatpush1.bf16.msra.mxu0 0
    %370 = vmatprep.subr.bf16.mxu0 0
    %371 = vmatpush1.bf16.msra.mxu0 0
    %372 = vmatprep.subr.bf16.mxu0 0
    %373 = vmatpush1.bf16.msra.mxu0 0
    %374 = vmatprep.subr.bf16.mxu0 0
    %375 = vmatpush1.bf16.msra.mxu0 0
    %376 = vmatprep.subr.bf16.mxu0 0
    %377 = vmatpush1.bf16.msra.mxu0 0
    %378 = vmatprep.mubr.bf16.mxu0 0
    %379 = vmatmul.mubr.bf16.gmra.mrb[0].mxu0 %v323
    %v380 = vpop.f32.mrb[0].mxu0
    %v381 = vadd.f32 0.0, %v380
    %v382 = vpop.f32.mrb[0].mxu0
    %v383 = vpop.f32.mrb[0].mxu0
    %v384 = vadd.f32 0.0, %v383
    %v385 = vpop.f32.mrb[0].mxu0
    %386 = vmatprep.mubr.bf16.mxu0 0
    %387 = vmatmul.mubr.bf16.gmra.mrb[0].mxu0 %v326
    %v388 = vpop.f32.mrb[0].mxu0
    %v389 = vadd.f32 0.0, %v388
    %v390 = vpop.f32.mrb[0].mxu0
    %v391 = vpop.f32.mrb[0].mxu0
    %v392 = vadd.f32 0.0, %v391
    %v393 = vpop.f32.mrb[0].mxu0
    %394 = vmatprep.mubr.bf16.mxu0 0
    %395 = vmatmul.mubr.bf16.gmra.mrb[0].mxu0 %v329
    %v396 = vpop.f32.mrb[0].mxu0
    %v397 = vadd.f32 0.0, %v396
    %v398 = vpop.f32.mrb[0].mxu0
    %v399 = vpop.f32.mrb[0].mxu0
    %v400 = vadd.f32 0.0, %v399
    %v401 = vpop.f32.mrb[0].mxu0
    %402 = vmatprep.mubr.bf16.mxu0 0
    %403 = vmatmul.mubr.bf16.gmra.mrb[0].mxu0 %v332
    %v404 = vpop.f32.mrb[0].mxu0
    %v405 = vadd.f32 0.0, %v404
    %v406 = vpop.f32.mrb[0].mxu0
    %v407 = vpop.f32.mrb[0].mxu0
    %v408 = vadd.f32 0.0, %v407
    %v409 = vpop.f32.mrb[0].mxu0
    %410 = vmatprep.mubr.bf16.mxu0 0
    %411 = vmatmul.mubr.bf16.gmra.mrb[0].mxu0 %v335
    %v412 = vpop.f32.mrb[0].mxu0
    %v413 = vadd.f32 0.0, %v412
    %v414 = vpop.f32.mrb[0].mxu0
    %v415 = vpop.f32.mrb[0].mxu0
    %v416 = vadd.f32 0.0, %v415
    %v417 = vpop.f32.mrb[0].mxu0
    %418 = vmatprep.mubr.bf16.mxu0 0
    %419 = vmatmul.mubr.bf16.gmra.mrb[0].mxu0 %v338
    %v420 = vpop.f32.mrb[0].mxu0
    %v421 = vadd.f32 0.0, %v420
    %v422 = vpop.f32.mrb[0].mxu0
    %v423 = vpop.f32.mrb[0].mxu0
    %v424 = vadd.f32 0.0, %v423
    %v425 = vpop.f32.mrb[0].mxu0
    %426 = vmatprep.mubr.bf16.mxu0 0
    %427 = vmatmul.mubr.bf16.gmra.mrb[0].mxu0 %v341
    %v428 = vpop.f32.mrb[0].mxu0
    %v429 = vadd.f32 0.0, %v428
    %v430 = vpop.f32.mrb[0].mxu0
    %v431 = vpop.f32.mrb[0].mxu0
    %v432 = vadd.f32 0.0, %v431
    %v433 = vpop.f32.mrb[0].mxu0
    %434 = vmatprep.mubr.bf16.mxu0 0
    %435 = vmatmul.mubr.bf16.gmra.mrb[0].mxu0 %v344
    %v436 = vpop.f32.mrb[0].mxu0
    %v437 = vadd.f32 0.0, %v436
    %v438 = vpop.f32.mrb[0].mxu0
    %v439 = vpop.f32.mrb[0].mxu0
    %v440 = vadd.f32 0.0, %v439
    %v441 = vpop.f32.mrb[0].mxu0
    %442 = vdwg.mxu0
    %v443 = vmul.f32 %v381, %v263
    %v444 = vmul.f32 %v384, %v264
    %v445 = vmul.f32 %v389, %v263
    %v446 = vmul.f32 %v392, %v264
    %v447 = vmul.f32 %v397, %v263
    %v448 = vmul.f32 %v400, %v264
    %v449 = vmul.f32 %v405, %v263
    %v450 = vmul.f32 %v408, %v264
    %v451 = vmul.f32 %v413, %v263
    %v452 = vmul.f32 %v416, %v264
    %v453 = vmul.f32 %v421, %v263
    %v454 = vmul.f32 %v424, %v264
    %v455 = vmul.f32 %v429, %v263
    %v456 = vmul.f32 %v432, %v264
    %v457 = vmul.f32 %v437, %v263
    %v458 = vmul.f32 %v440, %v264
    %v459 = vld [vmem:[%s4] sm:$0xff]
    %460 = vmatprep.subr.mxu0 0.0
    %461 = vmatpush1.msra.mxu0 %v443
    %462 = vmatprep.subr.mxu0 0.0
    %463 = vmatpush1.msra.mxu0 %v444
    %464 = vmatprep.subr.mxu0 0.0
    %465 = vmatpush1.msra.mxu0 %v445
    %466 = vmatprep.subr.mxu0 0.0
    %467 = vmatpush1.msra.mxu0 %v446
    %468 = vmatprep.subr.mxu0 0.0
    %469 = vmatpush1.msra.mxu0 %v447
    %470 = vmatprep.subr.mxu0 0.0
    %471 = vmatpush1.msra.mxu0 %v448
    %472 = vmatprep.subr.mxu0 0.0
    %473 = vmatpush1.msra.mxu0 %v449
    %474 = vmatprep.subr.mxu0 0.0
    %475 = vmatpush1.msra.mxu0 %v450
    %476 = vmatprep.subr.mxu0 0.0
    %477 = vmatpush1.msra.mxu0 %v451
    %478 = vmatprep.subr.mxu0 0.0
    %479 = vmatpush1.msra.mxu0 %v452
    %480 = vmatprep.subr.mxu0 0.0
    %481 = vmatpush1.msra.mxu0 %v453
    %482 = vmatprep.subr.mxu0 0.0
    %483 = vmatpush1.msra.mxu0 %v454
    %484 = vmatprep.subr.mxu0 0.0
    %485 = vmatpush1.msra.mxu0 %v455
    %486 = vmatprep.subr.mxu0 0.0
    %487 = vmatpush1.msra.mxu0 %v456
    %488 = vmatprep.subr.mxu0 0.0
    %489 = vmatpush1.msra.mxu0 %v457
    %490 = vmatprep.subr.mxu0 0.0
    %491 = vmatpush1.msra.mxu0 %v458
    %492 = vmatprep.subr.mxu0 0.0
    %493 = vmatpush1.msra.mxu0 0.0
    %494 = vmatprep.subr.mxu0 0.0
    %495 = vmatpush1.msra.mxu0 0.0
    %496 = vmatprep.subr.mxu0 0.0
    %497 = vmatpush1.msra.mxu0 0.0
    %498 = vmatprep.subr.mxu0 0.0
    %499 = vmatpush1.msra.mxu0 0.0
    %500 = vmatprep.subr.mxu0 0.0
    %501 = vmatpush1.msra.mxu0 0.0
    %502 = vmatprep.subr.mxu0 0.0
    %503 = vmatpush1.msra.mxu0 0.0
    %504 = vmatprep.subr.mxu0 0.0
    %505 = vmatpush1.msra.mxu0 0.0
    %506 = vmatprep.subr.mxu0 0.0
    %507 = vmatpush1.msra.mxu0 0.0
    %508 = vmatprep.subr.mxu0 0.0
    %509 = vmatpush1.msra.mxu0 0.0
    %510 = vmatprep.subr.mxu0 0.0
    %511 = vmatpush1.msra.mxu0 0.0
    %512 = vmatprep.subr.mxu0 0.0
    %513 = vmatpush1.msra.mxu0 0.0
    %514 = vmatprep.subr.mxu0 0.0
    %515 = vmatpush1.msra.mxu0 0.0
    %516 = vmatprep.subr.mxu0 0.0
    %517 = vmatpush1.msra.mxu0 0.0
    %518 = vmatprep.subr.mxu0 0.0
    %519 = vmatpush1.msra.mxu0 0.0
    %520 = vmatprep.subr.mxu0 0.0
    %521 = vmatpush1.msra.mxu0 0.0
    %522 = vmatprep.subr.mxu0 0.0
    %523 = vmatpush1.msra.mxu0 0.0
    %524 = vmatprep.mubr.f32.mxu0 0.0
    %525 = vmatmul.mubr.f32.gmra.mrb[0].mxu0 %v459
    %v526 = vpop.f32.mrb[0].mxu0
    %v527 = vadd.f32 0.0, %v526
    %v528 = vpop.f32.mrb[0].mxu0
    %529 = vdwg.mxu0
    %v530 = vmul.f32 %v527, %v178
    %v531 = vmul.f32 %v125, %v178
    %s532 = scalar_lea.vmem %s1, 8
    %v533 = vld [vmem:[%s532] sm:$0x3f]
    %v535 = vsel %vm50, %v533, 0
    %537 = vmatprep.subr.mxu0 0.0
    %538 = vmatpush1.msra.mxu0 %v56
    %539 = vmatprep.subr.mxu0 0.0
    %540 = vmatpush1.msra.mxu0 0.0
    %541 = vmatprep.subr.mxu0 0.0
    %542 = vmatpush1.msra.mxu0 0.0
    %543 = vmatprep.subr.mxu0 0.0
    %544 = vmatpush1.msra.mxu0 0.0
    %545 = vmatprep.subr.mxu0 0.0
    %546 = vmatpush1.msra.mxu0 0.0
    %547 = vmatprep.subr.mxu0 0.0
    %548 = vmatpush1.msra.mxu0 0.0
    %549 = vmatprep.subr.mxu0 0.0
    %550 = vmatpush1.msra.mxu0 0.0
    %551 = vmatprep.subr.mxu0 0.0
    %552 = vmatpush1.msra.mxu0 0.0
    %553 = vmatprep.subr.mxu0 0.0
    %554 = vmatpush1.msra.mxu0 0.0
    %555 = vmatprep.subr.mxu0 0.0
    %556 = vmatpush1.msra.mxu0 0.0
    %557 = vmatprep.subr.mxu0 0.0
    %558 = vmatpush1.msra.mxu0 0.0
    %559 = vmatprep.subr.mxu0 0.0
    %560 = vmatpush1.msra.mxu0 0.0
    %561 = vmatprep.subr.mxu0 0.0
    %562 = vmatpush1.msra.mxu0 0.0
    %563 = vmatprep.subr.mxu0 0.0
    %564 = vmatpush1.msra.mxu0 0.0
    %565 = vmatprep.subr.mxu0 0.0
    %566 = vmatpush1.msra.mxu0 0.0
    %567 = vmatprep.subr.mxu0 0.0
    %568 = vmatpush1.msra.mxu0 0.0
    %569 = vmatprep.subr.mxu0 0.0
    %570 = vmatpush1.msra.mxu0 0.0
    %571 = vmatprep.subr.mxu0 0.0
    %572 = vmatpush1.msra.mxu0 0.0
    %573 = vmatprep.subr.mxu0 0.0
    %574 = vmatpush1.msra.mxu0 0.0
    %575 = vmatprep.subr.mxu0 0.0
    %576 = vmatpush1.msra.mxu0 0.0
    %577 = vmatprep.subr.mxu0 0.0
    %578 = vmatpush1.msra.mxu0 0.0
    %579 = vmatprep.subr.mxu0 0.0
    %580 = vmatpush1.msra.mxu0 0.0
    %581 = vmatprep.subr.mxu0 0.0
    %582 = vmatpush1.msra.mxu0 0.0
    %583 = vmatprep.subr.mxu0 0.0
    %584 = vmatpush1.msra.mxu0 0.0
    %585 = vmatprep.subr.mxu0 0.0
    %586 = vmatpush1.msra.mxu0 0.0
    %587 = vmatprep.subr.mxu0 0.0
    %588 = vmatpush1.msra.mxu0 0.0
    %589 = vmatprep.subr.mxu0 0.0
    %590 = vmatpush1.msra.mxu0 0.0
    %591 = vmatprep.subr.mxu0 0.0
    %592 = vmatpush1.msra.mxu0 0.0
    %593 = vmatprep.subr.mxu0 0.0
    %594 = vmatpush1.msra.mxu0 0.0
    %595 = vmatprep.subr.mxu0 0.0
    %596 = vmatpush1.msra.mxu0 0.0
    %597 = vmatprep.subr.mxu0 0.0
    %598 = vmatpush1.msra.mxu0 0.0
    %599 = vmatprep.subr.mxu0 0.0
    %600 = vmatpush1.msra.mxu0 0.0
    %601 = vmatprep.mubr.f32.mxu0 0.0
    %602 = vmatmul.mubr.f32.gmra.mrb[0].mxu0 %v535
    %v603 = vpop.f32.mrb[0].mxu0
    %v604 = vadd.f32 0.0, %v603
    %v605 = vpop.f32.mrb[0].mxu0
    %606 = vdwg.mxu0
    %s607 = scalar_lea.vmem %s2, 8
    %v608 = vld [vmem:[%s607] sm:$0xff]
    %v609 = vlaneseq
    %v610 = vshrl.u32 %v609, 7
    %v611 = vsub.s32 3, %v610
    %v612 = vrot.slane %v604, %v611
    %614 = vset.pattern.permute.xlu0 0
    %615 = vperm.xlu0 %614, %v608
    %v616 = vpop.permute.xlu0 %615
    %v618 = vadd.f32 %v612, %v616
    %v619 = vlaneseq
    %v620 = vshrl.u32 %v619, 7
    %v621 = vsub.s32 4, %v620
    %v622 = vrot.slane %v604, %v621
    %623 = vset.pattern.permute.xlu0 1
    %624 = vperm.xlu0 %623, %v608
    %v625 = vpop.permute.xlu0 %624
    %v627 = vadd.f32 %v622, %v625
    %v628 = vlaneseq
    %v629 = vshrl.u32 %v628, 7
    %v630 = vsub.s32 5, %v629
    %v631 = vrot.slane %v604, %v630
    %632 = vset.pattern.permute.xlu0 2
    %633 = vperm.xlu0 %632, %v608
    %v634 = vpop.permute.xlu0 %633
    %v636 = vadd.f32 %v631, %v634
    %v637 = vmul.f32 %v618, 2.0
    %v638 = vmul.f32 %v636, 63.0
    %v639 = vsub.f32 %v637, %v638
    %v640 = vand.u32 2147483647, %v639
    %v641 = vmul.f32 %v636, 69.3
    %vm642 = vcmp.le.f32.partialorder %v640, %v641
    %v643 = vmul.f32 %v627, 2.0
    %v644 = vsub.f32 %v643, %v638
    %v645 = vand.u32 2147483647, %v644
    %vm646 = vcmp.le.f32.partialorder %v645, %v641
    %vm647 = vmand %vm642, %vm646
    %vm648 = vcmp.gt.f32.partialorder %v636, 0.0
    %vm649 = vmand %vm647, %vm648
    %v650 = vsel %vm649, 1, 0
    %v651 = vcvt.s32.f32 %v650
    %v652 = vrot.slane %v651, 4
    %v653 = vmax.f32 %v651, %v652
    %v654 = vrot.slane %v653, 2
    %v655 = vmax.f32 %v653, %v654
    %v656 = vrot.slane %v655, 1
    %v657 = vmax.f32 %v655, %v656
    %v658 = vmul.f32 %v657, %v48
    %v659 = vand.u32 2147483647, %v604
    %vm660 = vcmp.gt.f32.partialorder %v659, 1e-10
    %v661 = vsel %vm660, %v604, 1e-10
    %v662 = vrcp.pop %v661
    %v663 = vmul.f32 1.0, %v662
    %v665 = vrot.slane %v663, 2
    %v667 = vmul.f32 %v604, %v665
    %v668 = vmax.f32 %v667, 0.0
    %v669 = vmin.f32 %v668, 15.0
    %v670 = vrot.slane %v663, 1
    %v672 = vmul.f32 %v604, %v670
    %v673 = vmax.f32 %v672, 0.0
    %v674 = vmin.f32 %v673, 15.0
    %v675 = vfloor.f32 %v669
    %v676 = vfloor.f32 %v674
    %v677 = vsub.f32 %v669, %v675
    %v678 = vsub.f32 %v674, %v676
    %v679 = vsub.f32 1.0, %v677
    %v680 = vsub.f32 1.0, %v678
    %v681 = vcvt.f32.s32.to.zero.pseudo %v675
    %v682 = vcvt.f32.s32.to.zero.pseudo %v676
    %v683 = vadd.s32 %v681, 1
    %vm684 = vcmp.lt.s32.totalorder %v683, 15
    %v685 = vsel %vm684, %v683, 15
    %v686 = vadd.s32 %v682, 1
    %vm687 = vcmp.lt.s32.totalorder %v686, 15
    %v688 = vsel %vm687, %v686, 15
    %v689 = vlaneseq
    %v690 = vshrl.u32 %v689, 7
    %v691 = vsub.s32 0, %v690
    %v692 = vrot.slane %v681, %v691
    %vm693 = vcmp.eq.s32.totalorder %v210, %v692
    %vm694 = vcmp.eq.s32.totalorder %v211, %v692
    %v695 = vlaneseq
    %v696 = vshrl.u32 %v695, 7
    %v697 = vsub.s32 0, %v696
    %v698 = vrot.slane %v679, %v697
    %v699 = vsel %vm693, %v698, 0.0
    %v700 = vsel %vm694, %v698, 0.0
    %v701 = vlaneseq
    %v702 = vshrl.u32 %v701, 7
    %v703 = vsub.s32 0, %v702
    %v704 = vrot.slane %v685, %v703
    %vm705 = vcmp.eq.s32.totalorder %v210, %v704
    %vm706 = vcmp.eq.s32.totalorder %v211, %v704
    %v707 = vlaneseq
    %v708 = vshrl.u32 %v707, 7
    %v709 = vsub.s32 0, %v708
    %v710 = vrot.slane %v677, %v709
    %v711 = vsel %vm705, %v710, 0.0
    %v712 = vsel %vm706, %v710, 0.0
    %v713 = vadd.f32 %v699, %v711
    %v714 = vadd.f32 %v700, %v712
    %v715 = vpack.c.bf16 %v714, %v713
    %v716 = vlaneseq
    %v717 = vshrl.u32 %v716, 7
    %v718 = vsub.s32 1, %v717
    %v719 = vrot.slane %v682, %v718
    %vm720 = vcmp.eq.s32.totalorder %v210, %v719
    %vm721 = vcmp.eq.s32.totalorder %v211, %v719
    %v722 = vlaneseq
    %v723 = vshrl.u32 %v722, 7
    %v724 = vsub.s32 1, %v723
    %v725 = vrot.slane %v680, %v724
    %v726 = vsel %vm720, %v725, 0.0
    %v727 = vsel %vm721, %v725, 0.0
    %v728 = vlaneseq
    %v729 = vshrl.u32 %v728, 7
    %v730 = vsub.s32 1, %v729
    %v731 = vrot.slane %v688, %v730
    %vm732 = vcmp.eq.s32.totalorder %v210, %v731
    %vm733 = vcmp.eq.s32.totalorder %v211, %v731
    %v734 = vlaneseq
    %v735 = vshrl.u32 %v734, 7
    %v736 = vsub.s32 1, %v735
    %v737 = vrot.slane %v678, %v736
    %v738 = vsel %vm732, %v737, 0.0
    %v739 = vsel %vm733, %v737, 0.0
    %v740 = vadd.f32 %v726, %v738
    %v741 = vadd.f32 %v727, %v739
    %s742 = scalar_lea.vmem %s3, 64
    %v743 = vld [vmem:[%s742] sm:$0xf]
    %v744 = vld [vmem:[%s742 + $0x4] sm:$0xf]
    %v745 = vld [vmem:[%s742 + $0x8] sm:$0xf]
    %v746 = vld [vmem:[%s742 + $0xc] sm:$0xf]
    %v747 = vld [vmem:[%s742 + $0x10] sm:$0xf]
    %v748 = vld [vmem:[%s742 + $0x14] sm:$0xf]
    %v749 = vld [vmem:[%s742 + $0x18] sm:$0xf]
    %v750 = vld [vmem:[%s742 + $0x1c] sm:$0xf]
    %v751 = vld [vmem:[%s742 + $0x20] sm:$0xf]
    %v752 = vld [vmem:[%s742 + $0x24] sm:$0xf]
    %v753 = vld [vmem:[%s742 + $0x28] sm:$0xf]
    %v754 = vld [vmem:[%s742 + $0x2c] sm:$0xf]
    %v755 = vld [vmem:[%s742 + $0x30] sm:$0xf]
    %v756 = vld [vmem:[%s742 + $0x34] sm:$0xf]
    %v757 = vld [vmem:[%s742 + $0x38] sm:$0xf]
    %v758 = vld [vmem:[%s742 + $0x3c] sm:$0xf]
    %v775 = vunpack.c.l.b16 %v743
    %v776 = vunpack.c.l.b16 %v744
    %v777 = vunpack.c.l.b16 %v745
    %v778 = vunpack.c.l.b16 %v746
    %v779 = vunpack.c.l.b16 %v747
    %v780 = vunpack.c.l.b16 %v748
    %v781 = vunpack.c.l.b16 %v749
    %v782 = vunpack.c.l.b16 %v750
    %v783 = vunpack.c.l.b16 %v751
    %v784 = vunpack.c.l.b16 %v752
    %v785 = vunpack.c.l.b16 %v753
    %v786 = vunpack.c.l.b16 %v754
    %v787 = vunpack.c.l.b16 %v755
    %v788 = vunpack.c.l.b16 %v756
    %v789 = vunpack.c.l.b16 %v757
    %v790 = vunpack.c.l.b16 %v758
    %v791 = vpack.c.b16 %v776, %v775
    %v792 = vpack.c.b16 %v778, %v777
    %v793 = vpack.c.b16 %v780, %v779
    %v794 = vpack.c.b16 %v782, %v781
    %v795 = vpack.c.b16 %v784, %v783
    %v796 = vpack.c.b16 %v786, %v785
    %v797 = vpack.c.b16 %v788, %v787
    %v798 = vpack.c.b16 %v790, %v789
    %v800 = vsel %vm321, %v791, 0
    %v803 = vsel %vm321, %v792, 0
    %v806 = vsel %vm321, %v793, 0
    %v809 = vsel %vm321, %v794, 0
    %v812 = vsel %vm321, %v795, 0
    %v815 = vsel %vm321, %v796, 0
    %v818 = vsel %vm321, %v797, 0
    %v821 = vsel %vm321, %v798, 0
    %823 = vmatprep.subr.bf16.mxu0 0
    %824 = vmatpush1.bf16.msra.mxu0 %v715
    %825 = vmatprep.subr.bf16.mxu0 0
    %826 = vmatpush1.bf16.msra.mxu0 0
    %827 = vmatprep.subr.bf16.mxu0 0
    %828 = vmatpush1.bf16.msra.mxu0 0
    %829 = vmatprep.subr.bf16.mxu0 0
    %830 = vmatpush1.bf16.msra.mxu0 0
    %831 = vmatprep.subr.bf16.mxu0 0
    %832 = vmatpush1.bf16.msra.mxu0 0
    %833 = vmatprep.subr.bf16.mxu0 0
    %834 = vmatpush1.bf16.msra.mxu0 0
    %835 = vmatprep.subr.bf16.mxu0 0
    %836 = vmatpush1.bf16.msra.mxu0 0
    %837 = vmatprep.subr.bf16.mxu0 0
    %838 = vmatpush1.bf16.msra.mxu0 0
    %839 = vmatprep.subr.bf16.mxu0 0
    %840 = vmatpush1.bf16.msra.mxu0 0
    %841 = vmatprep.subr.bf16.mxu0 0
    %842 = vmatpush1.bf16.msra.mxu0 0
    %843 = vmatprep.subr.bf16.mxu0 0
    %844 = vmatpush1.bf16.msra.mxu0 0
    %845 = vmatprep.subr.bf16.mxu0 0
    %846 = vmatpush1.bf16.msra.mxu0 0
    %847 = vmatprep.subr.bf16.mxu0 0
    %848 = vmatpush1.bf16.msra.mxu0 0
    %849 = vmatprep.subr.bf16.mxu0 0
    %850 = vmatpush1.bf16.msra.mxu0 0
    %851 = vmatprep.subr.bf16.mxu0 0
    %852 = vmatpush1.bf16.msra.mxu0 0
    %853 = vmatprep.subr.bf16.mxu0 0
    %854 = vmatpush1.bf16.msra.mxu0 0
    %855 = vmatprep.mubr.bf16.mxu0 0
    %856 = vmatmul.mubr.bf16.gmra.mrb[0].mxu0 %v800
    %v857 = vpop.f32.mrb[0].mxu0
    %v858 = vadd.f32 0.0, %v857
    %v859 = vpop.f32.mrb[0].mxu0
    %v860 = vpop.f32.mrb[0].mxu0
    %v861 = vadd.f32 0.0, %v860
    %v862 = vpop.f32.mrb[0].mxu0
    %863 = vmatprep.mubr.bf16.mxu0 0
    %864 = vmatmul.mubr.bf16.gmra.mrb[0].mxu0 %v803
    %v865 = vpop.f32.mrb[0].mxu0
    %v866 = vadd.f32 0.0, %v865
    %v867 = vpop.f32.mrb[0].mxu0
    %v868 = vpop.f32.mrb[0].mxu0
    %v869 = vadd.f32 0.0, %v868
    %v870 = vpop.f32.mrb[0].mxu0
    %871 = vmatprep.mubr.bf16.mxu0 0
    %872 = vmatmul.mubr.bf16.gmra.mrb[0].mxu0 %v806
    %v873 = vpop.f32.mrb[0].mxu0
    %v874 = vadd.f32 0.0, %v873
    %v875 = vpop.f32.mrb[0].mxu0
    %v876 = vpop.f32.mrb[0].mxu0
    %v877 = vadd.f32 0.0, %v876
    %v878 = vpop.f32.mrb[0].mxu0
    %879 = vmatprep.mubr.bf16.mxu0 0
    %880 = vmatmul.mubr.bf16.gmra.mrb[0].mxu0 %v809
    %v881 = vpop.f32.mrb[0].mxu0
    %v882 = vadd.f32 0.0, %v881
    %v883 = vpop.f32.mrb[0].mxu0
    %v884 = vpop.f32.mrb[0].mxu0
    %v885 = vadd.f32 0.0, %v884
    %v886 = vpop.f32.mrb[0].mxu0
    %887 = vmatprep.mubr.bf16.mxu0 0
    %888 = vmatmul.mubr.bf16.gmra.mrb[0].mxu0 %v812
    %v889 = vpop.f32.mrb[0].mxu0
    %v890 = vadd.f32 0.0, %v889
    %v891 = vpop.f32.mrb[0].mxu0
    %v892 = vpop.f32.mrb[0].mxu0
    %v893 = vadd.f32 0.0, %v892
    %v894 = vpop.f32.mrb[0].mxu0
    %895 = vmatprep.mubr.bf16.mxu0 0
    %896 = vmatmul.mubr.bf16.gmra.mrb[0].mxu0 %v815
    %v897 = vpop.f32.mrb[0].mxu0
    %v898 = vadd.f32 0.0, %v897
    %v899 = vpop.f32.mrb[0].mxu0
    %v900 = vpop.f32.mrb[0].mxu0
    %v901 = vadd.f32 0.0, %v900
    %v902 = vpop.f32.mrb[0].mxu0
    %903 = vmatprep.mubr.bf16.mxu0 0
    %904 = vmatmul.mubr.bf16.gmra.mrb[0].mxu0 %v818
    %v905 = vpop.f32.mrb[0].mxu0
    %v906 = vadd.f32 0.0, %v905
    %v907 = vpop.f32.mrb[0].mxu0
    %v908 = vpop.f32.mrb[0].mxu0
    %v909 = vadd.f32 0.0, %v908
    %v910 = vpop.f32.mrb[0].mxu0
    %911 = vmatprep.mubr.bf16.mxu0 0
    %912 = vmatmul.mubr.bf16.gmra.mrb[0].mxu0 %v821
    %v913 = vpop.f32.mrb[0].mxu0
    %v914 = vadd.f32 0.0, %v913
    %v915 = vpop.f32.mrb[0].mxu0
    %v916 = vpop.f32.mrb[0].mxu0
    %v917 = vadd.f32 0.0, %v916
    %v918 = vpop.f32.mrb[0].mxu0
    %919 = vdwg.mxu0
    %v920 = vmul.f32 %v858, %v740
    %v921 = vmul.f32 %v861, %v741
    %v922 = vmul.f32 %v866, %v740
    %v923 = vmul.f32 %v869, %v741
    %v924 = vmul.f32 %v874, %v740
    %v925 = vmul.f32 %v877, %v741
    %v926 = vmul.f32 %v882, %v740
    %v927 = vmul.f32 %v885, %v741
    %v928 = vmul.f32 %v890, %v740
    %v929 = vmul.f32 %v893, %v741
    %v930 = vmul.f32 %v898, %v740
    %v931 = vmul.f32 %v901, %v741
    %v932 = vmul.f32 %v906, %v740
    %v933 = vmul.f32 %v909, %v741
    %v934 = vmul.f32 %v914, %v740
    %v935 = vmul.f32 %v917, %v741
    %936 = vmatprep.subr.mxu0 0.0
    %937 = vmatpush1.msra.mxu0 %v920
    %938 = vmatprep.subr.mxu0 0.0
    %939 = vmatpush1.msra.mxu0 %v921
    %940 = vmatprep.subr.mxu0 0.0
    %941 = vmatpush1.msra.mxu0 %v922
    %942 = vmatprep.subr.mxu0 0.0
    %943 = vmatpush1.msra.mxu0 %v923
    %944 = vmatprep.subr.mxu0 0.0
    %945 = vmatpush1.msra.mxu0 %v924
    %946 = vmatprep.subr.mxu0 0.0
    %947 = vmatpush1.msra.mxu0 %v925
    %948 = vmatprep.subr.mxu0 0.0
    %949 = vmatpush1.msra.mxu0 %v926
    %950 = vmatprep.subr.mxu0 0.0
    %951 = vmatpush1.msra.mxu0 %v927
    %952 = vmatprep.subr.mxu0 0.0
    %953 = vmatpush1.msra.mxu0 %v928
    %954 = vmatprep.subr.mxu0 0.0
    %955 = vmatpush1.msra.mxu0 %v929
    %956 = vmatprep.subr.mxu0 0.0
    %957 = vmatpush1.msra.mxu0 %v930
    %958 = vmatprep.subr.mxu0 0.0
    %959 = vmatpush1.msra.mxu0 %v931
    %960 = vmatprep.subr.mxu0 0.0
    %961 = vmatpush1.msra.mxu0 %v932
    %962 = vmatprep.subr.mxu0 0.0
    %963 = vmatpush1.msra.mxu0 %v933
    %964 = vmatprep.subr.mxu0 0.0
    %965 = vmatpush1.msra.mxu0 %v934
    %966 = vmatprep.subr.mxu0 0.0
    %967 = vmatpush1.msra.mxu0 %v935
    %968 = vmatprep.subr.mxu0 0.0
    %969 = vmatpush1.msra.mxu0 0.0
    %970 = vmatprep.subr.mxu0 0.0
    %971 = vmatpush1.msra.mxu0 0.0
    %972 = vmatprep.subr.mxu0 0.0
    %973 = vmatpush1.msra.mxu0 0.0
    %974 = vmatprep.subr.mxu0 0.0
    %975 = vmatpush1.msra.mxu0 0.0
    %976 = vmatprep.subr.mxu0 0.0
    %977 = vmatpush1.msra.mxu0 0.0
    %978 = vmatprep.subr.mxu0 0.0
    %979 = vmatpush1.msra.mxu0 0.0
    %980 = vmatprep.subr.mxu0 0.0
    %981 = vmatpush1.msra.mxu0 0.0
    %982 = vmatprep.subr.mxu0 0.0
    %983 = vmatpush1.msra.mxu0 0.0
    %984 = vmatprep.subr.mxu0 0.0
    %985 = vmatpush1.msra.mxu0 0.0
    %986 = vmatprep.subr.mxu0 0.0
    %987 = vmatpush1.msra.mxu0 0.0
    %988 = vmatprep.subr.mxu0 0.0
    %989 = vmatpush1.msra.mxu0 0.0
    %990 = vmatprep.subr.mxu0 0.0
    %991 = vmatpush1.msra.mxu0 0.0
    %992 = vmatprep.subr.mxu0 0.0
    %993 = vmatpush1.msra.mxu0 0.0
    %994 = vmatprep.subr.mxu0 0.0
    %995 = vmatpush1.msra.mxu0 0.0
    %996 = vmatprep.subr.mxu0 0.0
    %997 = vmatpush1.msra.mxu0 0.0
    %998 = vmatprep.subr.mxu0 0.0
    %999 = vmatpush1.msra.mxu0 0.0
    %1000 = vmatprep.mubr.f32.mxu0 0.0
    %1001 = vmatmul.mubr.f32.gmra.mrb[0].mxu0 %v459
    %v1002 = vpop.f32.mrb[0].mxu0
    %v1003 = vadd.f32 0.0, %v1002
    %v1004 = vpop.f32.mrb[0].mxu0
    %1005 = vdwg.mxu0
    %v1006 = vmul.f32 %v1003, %v658
    %v1007 = vmul.f32 %v604, %v658
    %s1008 = scalar_lea.vmem %s1, 16
    %v1009 = vld [vmem:[%s1008] sm:$0x3f]
    %v1011 = vsel %vm50, %v1009, 0
    %1013 = vmatprep.subr.mxu0 0.0
    %1014 = vmatpush1.msra.mxu0 %v56
    %1015 = vmatprep.subr.mxu0 0.0
    %1016 = vmatpush1.msra.mxu0 0.0
    %1017 = vmatprep.subr.mxu0 0.0
    %1018 = vmatpush1.msra.mxu0 0.0
    %1019 = vmatprep.subr.mxu0 0.0
    %1020 = vmatpush1.msra.mxu0 0.0
    %1021 = vmatprep.subr.mxu0 0.0
    %1022 = vmatpush1.msra.mxu0 0.0
    %1023 = vmatprep.subr.mxu0 0.0
    %1024 = vmatpush1.msra.mxu0 0.0
    %1025 = vmatprep.subr.mxu0 0.0
    %1026 = vmatpush1.msra.mxu0 0.0
    %1027 = vmatprep.subr.mxu0 0.0
    %1028 = vmatpush1.msra.mxu0 0.0
    %1029 = vmatprep.subr.mxu0 0.0
    %1030 = vmatpush1.msra.mxu0 0.0
    %1031 = vmatprep.subr.mxu0 0.0
    %1032 = vmatpush1.msra.mxu0 0.0
    %1033 = vmatprep.subr.mxu0 0.0
    %1034 = vmatpush1.msra.mxu0 0.0
    %1035 = vmatprep.subr.mxu0 0.0
    %1036 = vmatpush1.msra.mxu0 0.0
    %1037 = vmatprep.subr.mxu0 0.0
    %1038 = vmatpush1.msra.mxu0 0.0
    %1039 = vmatprep.subr.mxu0 0.0
    %1040 = vmatpush1.msra.mxu0 0.0
    %1041 = vmatprep.subr.mxu0 0.0
    %1042 = vmatpush1.msra.mxu0 0.0
    %1043 = vmatprep.subr.mxu0 0.0
    %1044 = vmatpush1.msra.mxu0 0.0
    %1045 = vmatprep.subr.mxu0 0.0
    %1046 = vmatpush1.msra.mxu0 0.0
    %1047 = vmatprep.subr.mxu0 0.0
    %1048 = vmatpush1.msra.mxu0 0.0
    %1049 = vmatprep.subr.mxu0 0.0
    %1050 = vmatpush1.msra.mxu0 0.0
    %1051 = vmatprep.subr.mxu0 0.0
    %1052 = vmatpush1.msra.mxu0 0.0
    %1053 = vmatprep.subr.mxu0 0.0
    %1054 = vmatpush1.msra.mxu0 0.0
    %1055 = vmatprep.subr.mxu0 0.0
    %1056 = vmatpush1.msra.mxu0 0.0
    %1057 = vmatprep.subr.mxu0 0.0
    %1058 = vmatpush1.msra.mxu0 0.0
    %1059 = vmatprep.subr.mxu0 0.0
    %1060 = vmatpush1.msra.mxu0 0.0
    %1061 = vmatprep.subr.mxu0 0.0
    %1062 = vmatpush1.msra.mxu0 0.0
    %1063 = vmatprep.subr.mxu0 0.0
    %1064 = vmatpush1.msra.mxu0 0.0
    %1065 = vmatprep.subr.mxu0 0.0
    %1066 = vmatpush1.msra.mxu0 0.0
    %1067 = vmatprep.subr.mxu0 0.0
    %1068 = vmatpush1.msra.mxu0 0.0
    %1069 = vmatprep.subr.mxu0 0.0
    %1070 = vmatpush1.msra.mxu0 0.0
    %1071 = vmatprep.subr.mxu0 0.0
    %1072 = vmatpush1.msra.mxu0 0.0
    %1073 = vmatprep.subr.mxu0 0.0
    %1074 = vmatpush1.msra.mxu0 0.0
    %1075 = vmatprep.subr.mxu0 0.0
    %1076 = vmatpush1.msra.mxu0 0.0
    %1077 = vmatprep.mubr.f32.mxu0 0.0
    %1078 = vmatmul.mubr.f32.gmra.mrb[0].mxu0 %v1011
    %v1079 = vpop.f32.mrb[0].mxu0
    %v1080 = vadd.f32 0.0, %v1079
    %v1081 = vpop.f32.mrb[0].mxu0
    %1082 = vdwg.mxu0
    %s1083 = scalar_lea.vmem %s2, 16
    %v1084 = vld [vmem:[%s1083] sm:$0xff]
    %v1085 = vlaneseq
    %v1086 = vshrl.u32 %v1085, 7
    %v1087 = vsub.s32 3, %v1086
    %v1088 = vrot.slane %v1080, %v1087
    %1090 = vset.pattern.permute.xlu0 0
    %1091 = vperm.xlu0 %1090, %v1084
    %v1092 = vpop.permute.xlu0 %1091
    %v1094 = vadd.f32 %v1088, %v1092
    %v1095 = vlaneseq
    %v1096 = vshrl.u32 %v1095, 7
    %v1097 = vsub.s32 4, %v1096
    %v1098 = vrot.slane %v1080, %v1097
    %1099 = vset.pattern.permute.xlu0 1
    %1100 = vperm.xlu0 %1099, %v1084
    %v1101 = vpop.permute.xlu0 %1100
    %v1103 = vadd.f32 %v1098, %v1101
    %v1104 = vlaneseq
    %v1105 = vshrl.u32 %v1104, 7
    %v1106 = vsub.s32 5, %v1105
    %v1107 = vrot.slane %v1080, %v1106
    %1108 = vset.pattern.permute.xlu0 2
    %1109 = vperm.xlu0 %1108, %v1084
    %v1110 = vpop.permute.xlu0 %1109
    %v1112 = vadd.f32 %v1107, %v1110
    %v1113 = vmul.f32 %v1094, 2.0
    %v1114 = vmul.f32 %v1112, 63.0
    %v1115 = vsub.f32 %v1113, %v1114
    %v1116 = vand.u32 2147483647, %v1115
    %v1117 = vmul.f32 %v1112, 69.3
    %vm1118 = vcmp.le.f32.partialorder %v1116, %v1117
    %v1119 = vmul.f32 %v1103, 2.0
    %v1120 = vsub.f32 %v1119, %v1114
    %v1121 = vand.u32 2147483647, %v1120
    %vm1122 = vcmp.le.f32.partialorder %v1121, %v1117
    %vm1123 = vmand %vm1118, %vm1122
    %vm1124 = vcmp.gt.f32.partialorder %v1112, 0.0
    %vm1125 = vmand %vm1123, %vm1124
    %v1126 = vsel %vm1125, 1, 0
    %v1127 = vcvt.s32.f32 %v1126
    %v1128 = vrot.slane %v1127, 4
    %v1129 = vmax.f32 %v1127, %v1128
    %v1130 = vrot.slane %v1129, 2
    %v1131 = vmax.f32 %v1129, %v1130
    %v1132 = vrot.slane %v1131, 1
    %v1133 = vmax.f32 %v1131, %v1132
    %v1134 = vmul.f32 %v1133, %v48
    %v1135 = vand.u32 2147483647, %v1080
    %vm1136 = vcmp.gt.f32.partialorder %v1135, 1e-10
    %v1137 = vsel %vm1136, %v1080, 1e-10
    %v1138 = vrcp.pop %v1137
    %v1139 = vmul.f32 1.0, %v1138
    %v1141 = vrot.slane %v1139, 2
    %v1143 = vmul.f32 %v1080, %v1141
    %v1144 = vmax.f32 %v1143, 0.0
    %v1145 = vmin.f32 %v1144, 15.0
    %v1146 = vrot.slane %v1139, 1
    %v1148 = vmul.f32 %v1080, %v1146
    %v1149 = vmax.f32 %v1148, 0.0
    %v1150 = vmin.f32 %v1149, 15.0
    %v1151 = vfloor.f32 %v1145
    %v1152 = vfloor.f32 %v1150
    %v1153 = vsub.f32 %v1145, %v1151
    %v1154 = vsub.f32 %v1150, %v1152
    %v1155 = vsub.f32 1.0, %v1153
    %v1156 = vsub.f32 1.0, %v1154
    %v1157 = vcvt.f32.s32.to.zero.pseudo %v1151
    %v1158 = vcvt.f32.s32.to.zero.pseudo %v1152
    %v1159 = vadd.s32 %v1157, 1
    %vm1160 = vcmp.lt.s32.totalorder %v1159, 15
    %v1161 = vsel %vm1160, %v1159, 15
    %v1162 = vadd.s32 %v1158, 1
    %vm1163 = vcmp.lt.s32.totalorder %v1162, 15
    %v1164 = vsel %vm1163, %v1162, 15
    %v1165 = vlaneseq
    %v1166 = vshrl.u32 %v1165, 7
    %v1167 = vsub.s32 0, %v1166
    %v1168 = vrot.slane %v1157, %v1167
    %vm1169 = vcmp.eq.s32.totalorder %v210, %v1168
    %vm1170 = vcmp.eq.s32.totalorder %v211, %v1168
    %v1171 = vlaneseq
    %v1172 = vshrl.u32 %v1171, 7
    %v1173 = vsub.s32 0, %v1172
    %v1174 = vrot.slane %v1155, %v1173
    %v1175 = vsel %vm1169, %v1174, 0.0
    %v1176 = vsel %vm1170, %v1174, 0.0
    %v1177 = vlaneseq
    %v1178 = vshrl.u32 %v1177, 7
    %v1179 = vsub.s32 0, %v1178
    %v1180 = vrot.slane %v1161, %v1179
    %vm1181 = vcmp.eq.s32.totalorder %v210, %v1180
    %vm1182 = vcmp.eq.s32.totalorder %v211, %v1180
    %v1183 = vlaneseq
    %v1184 = vshrl.u32 %v1183, 7
    %v1185 = vsub.s32 0, %v1184
    %v1186 = vrot.slane %v1153, %v1185
    %v1187 = vsel %vm1181, %v1186, 0.0
    %v1188 = vsel %vm1182, %v1186, 0.0
    %v1189 = vadd.f32 %v1175, %v1187
    %v1190 = vadd.f32 %v1176, %v1188
    %v1191 = vpack.c.bf16 %v1190, %v1189
    %v1192 = vlaneseq
    %v1193 = vshrl.u32 %v1192, 7
    %v1194 = vsub.s32 1, %v1193
    %v1195 = vrot.slane %v1158, %v1194
    %vm1196 = vcmp.eq.s32.totalorder %v210, %v1195
    %vm1197 = vcmp.eq.s32.totalorder %v211, %v1195
    %v1198 = vlaneseq
    %v1199 = vshrl.u32 %v1198, 7
    %v1200 = vsub.s32 1, %v1199
    %v1201 = vrot.slane %v1156, %v1200
    %v1202 = vsel %vm1196, %v1201, 0.0
    %v1203 = vsel %vm1197, %v1201, 0.0
    %v1204 = vlaneseq
    %v1205 = vshrl.u32 %v1204, 7
    %v1206 = vsub.s32 1, %v1205
    %v1207 = vrot.slane %v1164, %v1206
    %vm1208 = vcmp.eq.s32.totalorder %v210, %v1207
    %vm1209 = vcmp.eq.s32.totalorder %v211, %v1207
    %v1210 = vlaneseq
    %v1211 = vshrl.u32 %v1210, 7
    %v1212 = vsub.s32 1, %v1211
    %v1213 = vrot.slane %v1154, %v1212
    %v1214 = vsel %vm1208, %v1213, 0.0
    %v1215 = vsel %vm1209, %v1213, 0.0
    %v1216 = vadd.f32 %v1202, %v1214
    %v1217 = vadd.f32 %v1203, %v1215
    %s1218 = scalar_lea.vmem %s3, 128
    %v1219 = vld [vmem:[%s1218] sm:$0xf]
    %v1220 = vld [vmem:[%s1218 + $0x4] sm:$0xf]
    %v1221 = vld [vmem:[%s1218 + $0x8] sm:$0xf]
    %v1222 = vld [vmem:[%s1218 + $0xc] sm:$0xf]
    %v1223 = vld [vmem:[%s1218 + $0x10] sm:$0xf]
    %v1224 = vld [vmem:[%s1218 + $0x14] sm:$0xf]
    %v1225 = vld [vmem:[%s1218 + $0x18] sm:$0xf]
    %v1226 = vld [vmem:[%s1218 + $0x1c] sm:$0xf]
    %v1227 = vld [vmem:[%s1218 + $0x20] sm:$0xf]
    %v1228 = vld [vmem:[%s1218 + $0x24] sm:$0xf]
    %v1229 = vld [vmem:[%s1218 + $0x28] sm:$0xf]
    %v1230 = vld [vmem:[%s1218 + $0x2c] sm:$0xf]
    %v1231 = vld [vmem:[%s1218 + $0x30] sm:$0xf]
    %v1232 = vld [vmem:[%s1218 + $0x34] sm:$0xf]
    %v1233 = vld [vmem:[%s1218 + $0x38] sm:$0xf]
    %v1234 = vld [vmem:[%s1218 + $0x3c] sm:$0xf]
    %v1251 = vunpack.c.l.b16 %v1219
    %v1252 = vunpack.c.l.b16 %v1220
    %v1253 = vunpack.c.l.b16 %v1221
    %v1254 = vunpack.c.l.b16 %v1222
    %v1255 = vunpack.c.l.b16 %v1223
    %v1256 = vunpack.c.l.b16 %v1224
    %v1257 = vunpack.c.l.b16 %v1225
    %v1258 = vunpack.c.l.b16 %v1226
    %v1259 = vunpack.c.l.b16 %v1227
    %v1260 = vunpack.c.l.b16 %v1228
    %v1261 = vunpack.c.l.b16 %v1229
    %v1262 = vunpack.c.l.b16 %v1230
    %v1263 = vunpack.c.l.b16 %v1231
    %v1264 = vunpack.c.l.b16 %v1232
    %v1265 = vunpack.c.l.b16 %v1233
    %v1266 = vunpack.c.l.b16 %v1234
    %v1267 = vpack.c.b16 %v1252, %v1251
    %v1268 = vpack.c.b16 %v1254, %v1253
    %v1269 = vpack.c.b16 %v1256, %v1255
    %v1270 = vpack.c.b16 %v1258, %v1257
    %v1271 = vpack.c.b16 %v1260, %v1259
    %v1272 = vpack.c.b16 %v1262, %v1261
    %v1273 = vpack.c.b16 %v1264, %v1263
    %v1274 = vpack.c.b16 %v1266, %v1265
    %v1276 = vsel %vm321, %v1267, 0
    %v1279 = vsel %vm321, %v1268, 0
    %v1282 = vsel %vm321, %v1269, 0
    %v1285 = vsel %vm321, %v1270, 0
    %v1288 = vsel %vm321, %v1271, 0
    %v1291 = vsel %vm321, %v1272, 0
    %v1294 = vsel %vm321, %v1273, 0
    %v1297 = vsel %vm321, %v1274, 0
    %1299 = vmatprep.subr.bf16.mxu0 0
    %1300 = vmatpush1.bf16.msra.mxu0 %v1191
    %1301 = vmatprep.subr.bf16.mxu0 0
    %1302 = vmatpush1.bf16.msra.mxu0 0
    %1303 = vmatprep.subr.bf16.mxu0 0
    %1304 = vmatpush1.bf16.msra.mxu0 0
    %1305 = vmatprep.subr.bf16.mxu0 0
    %1306 = vmatpush1.bf16.msra.mxu0 0
    %1307 = vmatprep.subr.bf16.mxu0 0
    %1308 = vmatpush1.bf16.msra.mxu0 0
    %1309 = vmatprep.subr.bf16.mxu0 0
    %1310 = vmatpush1.bf16.msra.mxu0 0
    %1311 = vmatprep.subr.bf16.mxu0 0
    %1312 = vmatpush1.bf16.msra.mxu0 0
    %1313 = vmatprep.subr.bf16.mxu0 0
    %1314 = vmatpush1.bf16.msra.mxu0 0
    %1315 = vmatprep.subr.bf16.mxu0 0
    %1316 = vmatpush1.bf16.msra.mxu0 0
    %1317 = vmatprep.subr.bf16.mxu0 0
    %1318 = vmatpush1.bf16.msra.mxu0 0
    %1319 = vmatprep.subr.bf16.mxu0 0
    %1320 = vmatpush1.bf16.msra.mxu0 0
    %1321 = vmatprep.subr.bf16.mxu0 0
    %1322 = vmatpush1.bf16.msra.mxu0 0
    %1323 = vmatprep.subr.bf16.mxu0 0
    %1324 = vmatpush1.bf16.msra.mxu0 0
    %1325 = vmatprep.subr.bf16.mxu0 0
    %1326 = vmatpush1.bf16.msra.mxu0 0
    %1327 = vmatprep.subr.bf16.mxu0 0
    %1328 = vmatpush1.bf16.msra.mxu0 0
    %1329 = vmatprep.subr.bf16.mxu0 0
    %1330 = vmatpush1.bf16.msra.mxu0 0
    %1331 = vmatprep.mubr.bf16.mxu0 0
    %1332 = vmatmul.mubr.bf16.gmra.mrb[0].mxu0 %v1276
    %v1333 = vpop.f32.mrb[0].mxu0
    %v1334 = vadd.f32 0.0, %v1333
    %v1335 = vpop.f32.mrb[0].mxu0
    %v1336 = vpop.f32.mrb[0].mxu0
    %v1337 = vadd.f32 0.0, %v1336
    %v1338 = vpop.f32.mrb[0].mxu0
    %1339 = vmatprep.mubr.bf16.mxu0 0
    %1340 = vmatmul.mubr.bf16.gmra.mrb[0].mxu0 %v1279
    %v1341 = vpop.f32.mrb[0].mxu0
    %v1342 = vadd.f32 0.0, %v1341
    %v1343 = vpop.f32.mrb[0].mxu0
    %v1344 = vpop.f32.mrb[0].mxu0
    %v1345 = vadd.f32 0.0, %v1344
    %v1346 = vpop.f32.mrb[0].mxu0
    %1347 = vmatprep.mubr.bf16.mxu0 0
    %1348 = vmatmul.mubr.bf16.gmra.mrb[0].mxu0 %v1282
    %v1349 = vpop.f32.mrb[0].mxu0
    %v1350 = vadd.f32 0.0, %v1349
    %v1351 = vpop.f32.mrb[0].mxu0
    %v1352 = vpop.f32.mrb[0].mxu0
    %v1353 = vadd.f32 0.0, %v1352
    %v1354 = vpop.f32.mrb[0].mxu0
    %1355 = vmatprep.mubr.bf16.mxu0 0
    %1356 = vmatmul.mubr.bf16.gmra.mrb[0].mxu0 %v1285
    %v1357 = vpop.f32.mrb[0].mxu0
    %v1358 = vadd.f32 0.0, %v1357
    %v1359 = vpop.f32.mrb[0].mxu0
    %v1360 = vpop.f32.mrb[0].mxu0
    %v1361 = vadd.f32 0.0, %v1360
    %v1362 = vpop.f32.mrb[0].mxu0
    %1363 = vmatprep.mubr.bf16.mxu0 0
    %1364 = vmatmul.mubr.bf16.gmra.mrb[0].mxu0 %v1288
    %v1365 = vpop.f32.mrb[0].mxu0
    %v1366 = vadd.f32 0.0, %v1365
    %v1367 = vpop.f32.mrb[0].mxu0
    %v1368 = vpop.f32.mrb[0].mxu0
    %v1369 = vadd.f32 0.0, %v1368
    %v1370 = vpop.f32.mrb[0].mxu0
    %1371 = vmatprep.mubr.bf16.mxu0 0
    %1372 = vmatmul.mubr.bf16.gmra.mrb[0].mxu0 %v1291
    %v1373 = vpop.f32.mrb[0].mxu0
    %v1374 = vadd.f32 0.0, %v1373
    %v1375 = vpop.f32.mrb[0].mxu0
    %v1376 = vpop.f32.mrb[0].mxu0
    %v1377 = vadd.f32 0.0, %v1376
    %v1378 = vpop.f32.mrb[0].mxu0
    %1379 = vmatprep.mubr.bf16.mxu0 0
    %1380 = vmatmul.mubr.bf16.gmra.mrb[0].mxu0 %v1294
    %v1381 = vpop.f32.mrb[0].mxu0
    %v1382 = vadd.f32 0.0, %v1381
    %v1383 = vpop.f32.mrb[0].mxu0
    %v1384 = vpop.f32.mrb[0].mxu0
    %v1385 = vadd.f32 0.0, %v1384
    %v1386 = vpop.f32.mrb[0].mxu0
    %1387 = vmatprep.mubr.bf16.mxu0 0
    %1388 = vmatmul.mubr.bf16.gmra.mrb[0].mxu0 %v1297
    %v1389 = vpop.f32.mrb[0].mxu0
    %v1390 = vadd.f32 0.0, %v1389
    %v1391 = vpop.f32.mrb[0].mxu0
    %v1392 = vpop.f32.mrb[0].mxu0
    %v1393 = vadd.f32 0.0, %v1392
    %v1394 = vpop.f32.mrb[0].mxu0
    %1395 = vdwg.mxu0
    %v1396 = vmul.f32 %v1334, %v1216
    %v1397 = vmul.f32 %v1337, %v1217
    %v1398 = vmul.f32 %v1342, %v1216
    %v1399 = vmul.f32 %v1345, %v1217
    %v1400 = vmul.f32 %v1350, %v1216
    %v1401 = vmul.f32 %v1353, %v1217
    %v1402 = vmul.f32 %v1358, %v1216
    %v1403 = vmul.f32 %v1361, %v1217
    %v1404 = vmul.f32 %v1366, %v1216
    %v1405 = vmul.f32 %v1369, %v1217
    %v1406 = vmul.f32 %v1374, %v1216
    %v1407 = vmul.f32 %v1377, %v1217
    %v1408 = vmul.f32 %v1382, %v1216
    %v1409 = vmul.f32 %v1385, %v1217
    %v1410 = vmul.f32 %v1390, %v1216
    %v1411 = vmul.f32 %v1393, %v1217
    %1412 = vmatprep.subr.mxu0 0.0
    %1413 = vmatpush1.msra.mxu0 %v1396
    %1414 = vmatprep.subr.mxu0 0.0
    %1415 = vmatpush1.msra.mxu0 %v1397
    %1416 = vmatprep.subr.mxu0 0.0
    %1417 = vmatpush1.msra.mxu0 %v1398
    %1418 = vmatprep.subr.mxu0 0.0
    %1419 = vmatpush1.msra.mxu0 %v1399
    %1420 = vmatprep.subr.mxu0 0.0
    %1421 = vmatpush1.msra.mxu0 %v1400
    %1422 = vmatprep.subr.mxu0 0.0
    %1423 = vmatpush1.msra.mxu0 %v1401
    %1424 = vmatprep.subr.mxu0 0.0
    %1425 = vmatpush1.msra.mxu0 %v1402
    %1426 = vmatprep.subr.mxu0 0.0
    %1427 = vmatpush1.msra.mxu0 %v1403
    %1428 = vmatprep.subr.mxu0 0.0
    %1429 = vmatpush1.msra.mxu0 %v1404
    %1430 = vmatprep.subr.mxu0 0.0
    %1431 = vmatpush1.msra.mxu0 %v1405
    %1432 = vmatprep.subr.mxu0 0.0
    %1433 = vmatpush1.msra.mxu0 %v1406
    %1434 = vmatprep.subr.mxu0 0.0
    %1435 = vmatpush1.msra.mxu0 %v1407
    %1436 = vmatprep.subr.mxu0 0.0
    %1437 = vmatpush1.msra.mxu0 %v1408
    %1438 = vmatprep.subr.mxu0 0.0
    %1439 = vmatpush1.msra.mxu0 %v1409
    %1440 = vmatprep.subr.mxu0 0.0
    %1441 = vmatpush1.msra.mxu0 %v1410
    %1442 = vmatprep.subr.mxu0 0.0
    %1443 = vmatpush1.msra.mxu0 %v1411
    %1444 = vmatprep.subr.mxu0 0.0
    %1445 = vmatpush1.msra.mxu0 0.0
    %1446 = vmatprep.subr.mxu0 0.0
    %1447 = vmatpush1.msra.mxu0 0.0
    %1448 = vmatprep.subr.mxu0 0.0
    %1449 = vmatpush1.msra.mxu0 0.0
    %1450 = vmatprep.subr.mxu0 0.0
    %1451 = vmatpush1.msra.mxu0 0.0
    %1452 = vmatprep.subr.mxu0 0.0
    %1453 = vmatpush1.msra.mxu0 0.0
    %1454 = vmatprep.subr.mxu0 0.0
    %1455 = vmatpush1.msra.mxu0 0.0
    %1456 = vmatprep.subr.mxu0 0.0
    %1457 = vmatpush1.msra.mxu0 0.0
    %1458 = vmatprep.subr.mxu0 0.0
    %1459 = vmatpush1.msra.mxu0 0.0
    %1460 = vmatprep.subr.mxu0 0.0
    %1461 = vmatpush1.msra.mxu0 0.0
    %1462 = vmatprep.subr.mxu0 0.0
    %1463 = vmatpush1.msra.mxu0 0.0
    %1464 = vmatprep.subr.mxu0 0.0
    %1465 = vmatpush1.msra.mxu0 0.0
    %1466 = vmatprep.subr.mxu0 0.0
    %1467 = vmatpush1.msra.mxu0 0.0
    %1468 = vmatprep.subr.mxu0 0.0
    %1469 = vmatpush1.msra.mxu0 0.0
    %1470 = vmatprep.subr.mxu0 0.0
    %1471 = vmatpush1.msra.mxu0 0.0
    %1472 = vmatprep.subr.mxu0 0.0
    %1473 = vmatpush1.msra.mxu0 0.0
    %1474 = vmatprep.subr.mxu0 0.0
    %1475 = vmatpush1.msra.mxu0 0.0
    %1476 = vmatprep.mubr.f32.mxu0 0.0
    %1477 = vmatmul.mubr.f32.gmra.mrb[0].mxu0 %v459
    %v1478 = vpop.f32.mrb[0].mxu0
    %v1479 = vadd.f32 0.0, %v1478
    %v1480 = vpop.f32.mrb[0].mxu0
    %1481 = vdwg.mxu0
    %v1482 = vmul.f32 %v1479, %v1134
    %v1483 = vmul.f32 %v1080, %v1134
    %v1484 = vmul.f32 %v530, %v530
    %v1485 = vrot.slane %v1484, 4
    %v1486 = vadd.f32 %v1484, %v1485
    %v1487 = vrot.slane %v1486, 2
    %v1488 = vadd.f32 %v1486, %v1487
    %v1489 = vrot.slane %v1488, 1
    %v1490 = vadd.f32 %v1488, %v1489
    %v1491 = vadd.f32 %v1490, 1e-20
    %v1492 = vrsqrt.pop %v1491
    %v1493 = vmul.f32 %v530, %v1492
    %v1494 = vmul.f32 %v1006, %v1006
    %v1495 = vrot.slane %v1494, 4
    %v1496 = vadd.f32 %v1494, %v1495
    %v1497 = vrot.slane %v1496, 2
    %v1498 = vadd.f32 %v1496, %v1497
    %v1499 = vrot.slane %v1498, 1
    %v1500 = vadd.f32 %v1498, %v1499
    %v1501 = vadd.f32 %v1500, 1e-20
    %v1502 = vrsqrt.pop %v1501
    %v1503 = vmul.f32 %v1006, %v1502
    %v1504 = vmul.f32 %v1482, %v1482
    %v1505 = vrot.slane %v1504, 4
    %v1506 = vadd.f32 %v1504, %v1505
    %v1507 = vrot.slane %v1506, 2
    %v1508 = vadd.f32 %v1506, %v1507
    %v1509 = vrot.slane %v1508, 1
    %v1510 = vadd.f32 %v1508, %v1509
    %v1511 = vadd.f32 %v1510, 1e-20
    %v1512 = vrsqrt.pop %v1511
    %v1513 = vmul.f32 %v1482, %v1512
    %v1514 = vmul.f32 %v1493, %v1503
    %v1515 = vrot.slane %v1514, 4
    %v1516 = vadd.f32 %v1514, %v1515
    %v1517 = vrot.slane %v1516, 2
    %v1518 = vadd.f32 %v1516, %v1517
    %v1519 = vrot.slane %v1518, 1
    %v1520 = vadd.f32 %v1518, %v1519
    %v1521 = vmul.f32 %v1493, %v1513
    %v1522 = vrot.slane %v1521, 4
    %v1523 = vadd.f32 %v1521, %v1522
    %v1524 = vrot.slane %v1523, 2
    %v1525 = vadd.f32 %v1523, %v1524
    %v1526 = vrot.slane %v1525, 1
    %v1527 = vadd.f32 %v1525, %v1526
    %v1528 = vmul.f32 %v1503, %v1513
    %v1529 = vrot.slane %v1528, 4
    %v1530 = vadd.f32 %v1528, %v1529
    %v1531 = vrot.slane %v1530, 2
    %v1532 = vadd.f32 %v1530, %v1531
    %v1533 = vrot.slane %v1532, 1
    %v1534 = vadd.f32 %v1532, %v1533
    %vm1535 = vcmask 1040384
    %v1536 = vsel %vm1535, %v1520, %v1527
    %vm1537 = vcmask 1041408
    %v1538 = vsel %vm1537, %v1536, %v1520
    %vm1539 = vcmask 1042432
    %v1540 = vsel %vm1539, %v1538, %v1534
    %v1541 = vsel %vm54, %v1540, %v1527
    %vm1542 = vcmask 1044480
    %v1543 = vsel %vm1542, %v1541, %v1534
    %v1544 = vadd.f32 %v178, %v658
    %v1545 = vadd.f32 %v531, %v1007
    %v1546 = vadd.f32 %v1544, %v1134
    %v1547 = vadd.f32 %v1545, %v1483
    %v1548 = vadd.f32 %v1546, 1e-10
    %v1549 = vrcp.pop %v1548
    %v1550 = vmul.f32 %v1547, %v1549
    %v1551 = vld [vmem:[%s5] sm:$0xff]
    %v1552 = vld [vmem:[%s5 + $0x8] sm:$0xff]
    %v1553 = vld [vmem:[%s5 + $0x10] sm:$0xff]
    %v1554 = vld [vmem:[%s5 + $0x18] sm:$0xff]
    %v1555 = vld [vmem:[%s6] sm:$0xff]
    %v1556 = vld [vmem:[%s6 + $0x8] sm:$0xff]
    %v1557 = vld [vmem:[%s6 + $0x10] sm:$0xff]
    %v1558 = vld [vmem:[%s6 + $0x18] sm:$0xff]
    %1560 = vset.pattern.permute.xlu0 0
    %1561 = vperm.xlu0 %1560, %v1555
    %v1562 = vpop.permute.xlu0 %1561
    %1565 = vset.pattern.permute.xlu0 0
    %1566 = vperm.xlu0 %1565, %v1556
    %v1567 = vpop.permute.xlu0 %1566
    %1570 = vset.pattern.permute.xlu0 0
    %1571 = vperm.xlu0 %1570, %v1557
    %v1572 = vpop.permute.xlu0 %1571
    %1575 = vset.pattern.permute.xlu0 0
    %1576 = vperm.xlu0 %1575, %v1558
    %v1577 = vpop.permute.xlu0 %1576
    %vm1579 = vcmask 48128
    %v1581 = vsel %vm1579, %v1551, 0
    %v1584 = vsel %vm1579, %v1552, 0
    %v1587 = vsel %vm1579, %v1553, 0
    %v1590 = vsel %vm1579, %v1554, 0
    %vm1592 = vcmask 1045504
    %v1594 = vsel %vm1592, %v1543, 0
    %1596 = vmatprep.subr.mxu0 0.0
    %1597 = vmatpush1.msra.mxu0 %v1594
    %1598 = vmatprep.subr.mxu0 0.0
    %1599 = vmatpush1.msra.mxu0 0.0
    %1600 = vmatprep.subr.mxu0 0.0
    %1601 = vmatpush1.msra.mxu0 0.0
    %1602 = vmatprep.subr.mxu0 0.0
    %1603 = vmatpush1.msra.mxu0 0.0
    %1604 = vmatprep.subr.mxu0 0.0
    %1605 = vmatpush1.msra.mxu0 0.0
    %1606 = vmatprep.subr.mxu0 0.0
    %1607 = vmatpush1.msra.mxu0 0.0
    %1608 = vmatprep.subr.mxu0 0.0
    %1609 = vmatpush1.msra.mxu0 0.0
    %1610 = vmatprep.subr.mxu0 0.0
    %1611 = vmatpush1.msra.mxu0 0.0
    %1612 = vmatprep.subr.mxu0 0.0
    %1613 = vmatpush1.msra.mxu0 0.0
    %1614 = vmatprep.subr.mxu0 0.0
    %1615 = vmatpush1.msra.mxu0 0.0
    %1616 = vmatprep.subr.mxu0 0.0
    %1617 = vmatpush1.msra.mxu0 0.0
    %1618 = vmatprep.subr.mxu0 0.0
    %1619 = vmatpush1.msra.mxu0 0.0
    %1620 = vmatprep.subr.mxu0 0.0
    %1621 = vmatpush1.msra.mxu0 0.0
    %1622 = vmatprep.subr.mxu0 0.0
    %1623 = vmatpush1.msra.mxu0 0.0
    %1624 = vmatprep.subr.mxu0 0.0
    %1625 = vmatpush1.msra.mxu0 0.0
    %1626 = vmatprep.subr.mxu0 0.0
    %1627 = vmatpush1.msra.mxu0 0.0
    %1628 = vmatprep.subr.mxu0 0.0
    %1629 = vmatpush1.msra.mxu0 0.0
    %1630 = vmatprep.subr.mxu0 0.0
    %1631 = vmatpush1.msra.mxu0 0.0
    %1632 = vmatprep.subr.mxu0 0.0
    %1633 = vmatpush1.msra.mxu0 0.0
    %1634 = vmatprep.subr.mxu0 0.0
    %1635 = vmatpush1.msra.mxu0 0.0
    %1636 = vmatprep.subr.mxu0 0.0
    %1637 = vmatpush1.msra.mxu0 0.0
    %1638 = vmatprep.subr.mxu0 0.0
    %1639 = vmatpush1.msra.mxu0 0.0
    %1640 = vmatprep.subr.mxu0 0.0
    %1641 = vmatpush1.msra.mxu0 0.0
    %1642 = vmatprep.subr.mxu0 0.0
    %1643 = vmatpush1.msra.mxu0 0.0
    %1644 = vmatprep.subr.mxu0 0.0
    %1645 = vmatpush1.msra.mxu0 0.0
    %1646 = vmatprep.subr.mxu0 0.0
    %1647 = vmatpush1.msra.mxu0 0.0
    %1648 = vmatprep.subr.mxu0 0.0
    %1649 = vmatpush1.msra.mxu0 0.0
    %1650 = vmatprep.subr.mxu0 0.0
    %1651 = vmatpush1.msra.mxu0 0.0
    %1652 = vmatprep.subr.mxu0 0.0
    %1653 = vmatpush1.msra.mxu0 0.0
    %1654 = vmatprep.subr.mxu0 0.0
    %1655 = vmatpush1.msra.mxu0 0.0
    %1656 = vmatprep.subr.mxu0 0.0
    %1657 = vmatpush1.msra.mxu0 0.0
    %1658 = vmatprep.subr.mxu0 0.0
    %1659 = vmatpush1.msra.mxu0 0.0
    %1660 = vmatprep.mubr.f32.mxu0 0.0
    %1661 = vmatmul.mubr.f32.gmra.mrb[0].mxu0 %v1581
    %v1662 = vpop.f32.mrb[0].mxu0
    %v1663 = vadd.f32 %v1562, %v1662
    %v1664 = vpop.f32.mrb[0].mxu0
    %1665 = vmatprep.mubr.f32.mxu0 0.0
    %1666 = vmatmul.mubr.f32.gmra.mrb[0].mxu0 %v1584
    %v1667 = vpop.f32.mrb[0].mxu0
    %v1668 = vadd.f32 %v1567, %v1667
    %v1669 = vpop.f32.mrb[0].mxu0
    %1670 = vmatprep.mubr.f32.mxu0 0.0
    %1671 = vmatmul.mubr.f32.gmra.mrb[0].mxu0 %v1587
    %v1672 = vpop.f32.mrb[0].mxu0
    %v1673 = vadd.f32 %v1572, %v1672
    %v1674 = vpop.f32.mrb[0].mxu0
    %1675 = vmatprep.mubr.f32.mxu0 0.0
    %1676 = vmatmul.mubr.f32.gmra.mrb[0].mxu0 %v1590
    %v1677 = vpop.f32.mrb[0].mxu0
    %v1678 = vadd.f32 %v1577, %v1677
    %v1679 = vpop.f32.mrb[0].mxu0
    %1680 = vdwg.mxu0
    %v1681 = vmax.f32 %v1663, 0.0
    %v1682 = vmax.f32 %v1668, 0.0
    %v1683 = vmax.f32 %v1673, 0.0
    %v1684 = vmax.f32 %v1678, 0.0
    %v1685 = vld [vmem:[%s7] sm:$0x7]
    %v1686 = vld [vmem:[%s8] sm:$0x7]
    %1688 = vset.pattern.permute.xlu0 0
    %1689 = vperm.xlu0 %1688, %v1686
    %v1690 = vpop.permute.xlu0 %1689
    %vm1692 = vcmask 261120
    %v1694 = vsel %vm1692, %v1685, 0
    %1696 = vmatprep.subr.mxu0 0.0
    %1697 = vmatpush1.msra.mxu0 %v1681
    %1698 = vmatprep.subr.mxu0 0.0
    %1699 = vmatpush1.msra.mxu0 %v1682
    %1700 = vmatprep.subr.mxu0 0.0
    %1701 = vmatpush1.msra.mxu0 %v1683
    %1702 = vmatprep.subr.mxu0 0.0
    %1703 = vmatpush1.msra.mxu0 %v1684
    %1704 = vmatprep.subr.mxu0 0.0
    %1705 = vmatpush1.msra.mxu0 0.0
    %1706 = vmatprep.subr.mxu0 0.0
    %1707 = vmatpush1.msra.mxu0 0.0
    %1708 = vmatprep.subr.mxu0 0.0
    %1709 = vmatpush1.msra.mxu0 0.0
    %1710 = vmatprep.subr.mxu0 0.0
    %1711 = vmatpush1.msra.mxu0 0.0
    %1712 = vmatprep.subr.mxu0 0.0
    %1713 = vmatpush1.msra.mxu0 0.0
    %1714 = vmatprep.subr.mxu0 0.0
    %1715 = vmatpush1.msra.mxu0 0.0
    %1716 = vmatprep.subr.mxu0 0.0
    %1717 = vmatpush1.msra.mxu0 0.0
    %1718 = vmatprep.subr.mxu0 0.0
    %1719 = vmatpush1.msra.mxu0 0.0
    %1720 = vmatprep.subr.mxu0 0.0
    %1721 = vmatpush1.msra.mxu0 0.0
    %1722 = vmatprep.subr.mxu0 0.0
    %1723 = vmatpush1.msra.mxu0 0.0
    %1724 = vmatprep.subr.mxu0 0.0
    %1725 = vmatpush1.msra.mxu0 0.0
    %1726 = vmatprep.subr.mxu0 0.0
    %1727 = vmatpush1.msra.mxu0 0.0
    %1728 = vmatprep.subr.mxu0 0.0
    %1729 = vmatpush1.msra.mxu0 0.0
    %1730 = vmatprep.subr.mxu0 0.0
    %1731 = vmatpush1.msra.mxu0 0.0
    %1732 = vmatprep.subr.mxu0 0.0
    %1733 = vmatpush1.msra.mxu0 0.0
    %1734 = vmatprep.subr.mxu0 0.0
    %1735 = vmatpush1.msra.mxu0 0.0
    %1736 = vmatprep.subr.mxu0 0.0
    %1737 = vmatpush1.msra.mxu0 0.0
    %1738 = vmatprep.subr.mxu0 0.0
    %1739 = vmatpush1.msra.mxu0 0.0
    %1740 = vmatprep.subr.mxu0 0.0
    %1741 = vmatpush1.msra.mxu0 0.0
    %1742 = vmatprep.subr.mxu0 0.0
    %1743 = vmatpush1.msra.mxu0 0.0
    %1744 = vmatprep.subr.mxu0 0.0
    %1745 = vmatpush1.msra.mxu0 0.0
    %1746 = vmatprep.subr.mxu0 0.0
    %1747 = vmatpush1.msra.mxu0 0.0
    %1748 = vmatprep.subr.mxu0 0.0
    %1749 = vmatpush1.msra.mxu0 0.0
    %1750 = vmatprep.subr.mxu0 0.0
    %1751 = vmatpush1.msra.mxu0 0.0
    %1752 = vmatprep.subr.mxu0 0.0
    %1753 = vmatpush1.msra.mxu0 0.0
    %1754 = vmatprep.subr.mxu0 0.0
    %1755 = vmatpush1.msra.mxu0 0.0
    %1756 = vmatprep.subr.mxu0 0.0
    %1757 = vmatpush1.msra.mxu0 0.0
    %1758 = vmatprep.subr.mxu0 0.0
    %1759 = vmatpush1.msra.mxu0 0.0
    %1760 = vmatprep.mubr.f32.mxu0 0.0
    %1761 = vmatmul.mubr.f32.gmra.mrb[0].mxu0 %v1694
    %v1762 = vpop.f32.mrb[0].mxu0
    %v1763 = vadd.f32 %v1690, %v1762
    %v1764 = vpop.f32.mrb[0].mxu0
    %1765 = vdwg.mxu0
    %v1766 = vsub.f32 0.0, %v1763
    %v1767 = vmul.f32 %v1766, 1.442695
    %v1768 = vpow.pop %v1767
    %v1769 = vadd.f32 %v1768, 1.0
    %v1770 = vrcp.pop %v1769
    %v1771 = vsel %vm1535, %v178, %v658
    %v1772 = vsel %vm1537, %v1771, %v1134
    %v1773 = vmul.f32 %v1770, %v1772
    %v1774 = vlaneseq
    %v1775 = vshrl.u32 %v1774, 7
    %v1776 = vsub.s32 0, %v1775
    %v1777 = vrot.slane %v1773, %v1776
    %v1778 = vmul.f32 %v530, %v1777
    %v1779 = vlaneseq
    %v1780 = vshrl.u32 %v1779, 7
    %v1781 = vsub.s32 1, %v1780
    %v1782 = vrot.slane %v1773, %v1781
    %v1783 = vmul.f32 %v1006, %v1782
    %v1784 = vadd.f32 %v1778, %v1783
    %v1785 = vlaneseq
    %v1786 = vshrl.u32 %v1785, 7
    %v1787 = vsub.s32 2, %v1786
    %v1788 = vrot.slane %v1773, %v1787
    %v1789 = vmul.f32 %v1482, %v1788
    %v1790 = vadd.f32 %v1784, %v1789
    %1791 = vst [vmem:[#allocation2] sm:$0xff] %v1790
    %1792 = vst [vmem:[#allocation4 - $0x2] sm:$0x4] %v1550
    %1793 = vst [vmem:[#allocation6] sm:$0x7] %v1773
    %1794 = vst [vmem:[#allocation7] sm:$0x1] %v1546
    // Predicated region
    $region38: #{tpu_custom_call.1} parent=1 // pred_check
      _
    $region39: #{tpu_custom_call.1} parent=1 // pred_check_branch
      %1796 = sbr.rel (0) target = $region41
    $region40: #{tpu_custom_call.1} parent=1 // pred_region
      %s1798 = ssub.s32 128, 128
      %1799 = vsyncadd [#allocation3], %s1798
      %s1801 = sshll.u32 [#allocation2], 4
      %s1802 = int_to_ptr.vmem [resolvable:$true] %s1801
      %1804 = dma.vmem_to_hbm [thread:$0]  %s1802, 128, %s9, [#allocation3]
    $region41: #{tpu_custom_call.1} parent=1 // pred_fallthru
      _
    // Predicated region
    $region42: #{tpu_custom_call.1} parent=1 // pred_check
      _
    $region43: #{tpu_custom_call.1} parent=1 // pred_check_branch
      %1806 = sbr.rel (0) target = $region45
    $region44: #{tpu_custom_call.1} parent=1 // pred_region
      %s1808 = ssub.s32 16, 16
      %1809 = vsyncadd [#allocation5], %s1808
      %s1811 = sshll.u32 [#allocation4], 4
      %s1812 = int_to_ptr.vmem [resolvable:$true] %s1811
      %1814 = dma.vmem_to_hbm [thread:$0]  %s1812, 16, %s10, [#allocation5]
    $region45: #{tpu_custom_call.1} parent=1 // pred_fallthru
      _
    // Predicated region
    $region46: #{tpu_custom_call.1} parent=1 // pred_check
      _
    $region47: #{tpu_custom_call.1} parent=1 // pred_check_branch
      %1816 = sbr.rel (0) target = $region49
    $region48: #{tpu_custom_call.1} parent=1 // pred_region
      %s1818 = ssub.s32 64, 64
      %1819 = vsyncadd [#allocation5], %s1818
      %s1821 = sshll.u32 [#allocation6], 4
      %s1822 = int_to_ptr.vmem [resolvable:$true] %s1821
      %1824 = dma.vmem_to_hbm [thread:$0]  %s1822, 64, %s11, [#allocation5]
    $region49: #{tpu_custom_call.1} parent=1 // pred_fallthru
      _
    // Predicated region
    $region50: #{tpu_custom_call.1} parent=1 // pred_check
      _
    $region51: #{tpu_custom_call.1} parent=1 // pred_check_branch
      %1826 = sbr.rel (0) target = $region53
    $region52: #{tpu_custom_call.1} parent=1 // pred_region
      %s1828 = ssub.s32 16, 16
      %1829 = vsyncadd [#allocation8], %s1828
      %s1831 = sshll.u32 [#allocation7], 4
      %s1832 = int_to_ptr.vmem [resolvable:$true] %s1831
      %1834 = dma.vmem_to_hbm [thread:$0]  %s1832, 16, %s12, [#allocation8]
    $region53: #{tpu_custom_call.1} parent=1 // pred_fallthru
      _
    // Predicated region
    $region54: #{tpu_custom_call.1} parent=1 // pred_check
      _
    $region55: #{tpu_custom_call.1} parent=1 // pred_check_branch
      %1836 = sbr.rel (0) target = $region57
    $region56: #{tpu_custom_call.1} parent=1 // pred_region
      %1837 = dma.done [#allocation3], 128
    $region57: #{tpu_custom_call.1} parent=1 // pred_fallthru
      _
    // Predicated region
    $region58: #{tpu_custom_call.1} parent=1 // pred_check
      _
    $region59: #{tpu_custom_call.1} parent=1 // pred_check_branch
      %1839 = sbr.rel (0) target = $region61
    $region60: #{tpu_custom_call.1} parent=1 // pred_region
      %1840 = dma.done [#allocation5], 16
    $region61: #{tpu_custom_call.1} parent=1 // pred_fallthru
      _
    // Predicated region
    $region62: #{tpu_custom_call.1} parent=1 // pred_check
      _
    $region63: #{tpu_custom_call.1} parent=1 // pred_check_branch
      %1842 = sbr.rel (0) target = $region65
    $region64: #{tpu_custom_call.1} parent=1 // pred_region
      %1843 = dma.done [#allocation5], 64
    $region65: #{tpu_custom_call.1} parent=1 // pred_fallthru
      _
    // Predicated region
    $region66: #{tpu_custom_call.1} parent=1 // pred_check
      _
    $region67: #{tpu_custom_call.1} parent=1 // pred_check_branch
      %1845 = sbr.rel (0) target = $region69
    $region68: #{tpu_custom_call.1} parent=1 // pred_region
      %1846 = dma.done [#allocation8], 16
    $region69: #{tpu_custom_call.1} parent=1 // pred_fallthru
      _
    %1847 = vsyncpa [#allocation3], 1
    %1848 = vsyncpa [#allocation5], 1
    %1849 = vsyncpa [#allocation8], 1

</llo_original>
